<compile_context>
chip_gen: v7x
topology: tpu7x:2x2x1
jax: 0.10.0
libtpu: 0.0.40
codegen_flags: <defaults>
</compile_context>

<pallas_src>
import jax
import jax.numpy as jnp
from jax.experimental import pallas as pl
from jax.experimental.pallas import tpu as pltpu


def lstm_fc_kernel(x_ref, wih0_ref, b0_ref, wrec_ref, b1_ref,
                   fcw_ref, fcb_ref, out_ref):
    """2-layer LSTM (diagonal-interleaved) + Linear, whole sequence at once.

    x_ref:    (T, B, D_in) f32   time-major (wrapper does the tiny transpose)
    wih0_ref: (D_in, 4H)   b0_ref: (1, 4H)   (b = b_ih + b_hh, layer 0)
    wrec_ref: (2H, 8H)     fused block matrix [[Whh0, Wih1], [0, Whh1]]
    b1_ref:   (1, 4H)      (b = b_ih + b_hh, layer 1)
    fcw_ref:  (H, O)       fcb_ref: (1, O)
    out_ref:  (T*B, O)     time-major flat output (row = t*B + b)
    """
    T, B, D = x_ref.shape
    H4 = wih0_ref.shape[1]
    H = H4 // 4

    def lstm_gate(gates, c):
        # PyTorch gate order along 4H: [i, f, g, o].
        # One sigmoid pass over 4H; tanh only on the g slice (EUP savings).
        sg = jax.nn.sigmoid(gates)
        g = jnp.tanh(gates[:, 2 * H:3 * H])
        i = sg[:, 0 * H:1 * H]
        f = sg[:, 1 * H:2 * H]
        o = sg[:, 3 * H:4 * H]
        c_new = f * c + i * g
        h_new = o * jnp.tanh(c_new)
        return h_new, c_new

    # ---- layer-0 input projection: ONE batched MXU matmul, bias folded -----
    x_flat = x_ref[...].reshape(T * B, D)
    gx0 = (jnp.dot(x_flat, wih0_ref[...], preferred_element_type=jnp.float32)
           + b0_ref[...])                                  # (T*B, 4H)

    w_rec = wrec_ref[...]                                  # (2H, 8H)
    b1 = b1_ref[...]                                       # (1, 4H)

    zeros = jnp.zeros((B, H), jnp.float32)                 # zero h0/c0, as in forward()

    # ---- diagonal step d = 0: layer-0 step 0 (h0_{-1} = 0) ------------------
    h0, c0 = lstm_gate(gx0[0:B, :], zeros)
    h1, c1 = zeros, zeros

    # ---- diagonal steps d = 1..T: layer-1 step d-1 + layer-0 step d ---------
    # States stay in registers (Python values); T static -> fully unrolled.
    h1_steps = []
    for d in range(1, T + 1):
        lhs = jnp.concatenate([h0, h1], axis=1)            # (B, 2H)
        rec = jnp.dot(lhs, w_rec,
                      preferred_element_type=jnp.float32)  # (B, 8H), one MXU pass
        # layer-1 step d-1: input proj (h0 @ Wih1) + recurrent (h1 @ Whh1) fused
        h1, c1 = lstm_gate(rec[:, 4 * H:8 * H] + b1, c1)
        h1_steps.append(h1)
        # layer-0 step d: hoisted input proj + recurrent term from fused matmul
        if d < T:
            h0, c0 = lstm_gate(gx0[d * B:(d + 1) * B, :] + rec[:, 0:4 * H], c0)

    # ---- FC head: one batched matmul, one flat store -----------------------
    h1_flat = jnp.concatenate(h1_steps, axis=0)            # (T*B, H) time-major
    out = (jnp.dot(h1_flat, fcw_ref[...], preferred_element_type=jnp.float32)
           + fcb_ref[...])
    out_ref[...] = out


def sequence_model_forward(x, params):
    """x: (B, T, D_in) float32 -> (B, T, O) float32."""
    B, T, D_in = x.shape
    H = params["whh0"].shape[0]
    O = params["fcw"].shape[1]

    # Fused block-diagonal recurrent weight: [[Whh0, Wih1], [0, Whh1]] (2H, 8H).
    w_rec = jnp.concatenate(
        [jnp.concatenate([params["whh0"], params["wih1"]], axis=1),
         jnp.concatenate([jnp.zeros((H, 4 * H), jnp.float32), params["whh1"]],
                         axis=1)],
        axis=0)

    # Tiny wrapper-side layout plumbing (keeps all per-step kernel slices
    # contiguous): x -> time-major; flat time-major output -> (B, T, O).
    x_tm = jnp.swapaxes(x, 0, 1)                           # (T, B, D_in)

    out_flat = pl.pallas_call(
        lstm_fc_kernel,
        out_shape=jax.ShapeDtypeStruct((T * B, O), jnp.float32),
        in_specs=[pl.BlockSpec(memory_space=pltpu.MemorySpace.VMEM)] * 7,
        out_specs=pl.BlockSpec(memory_space=pltpu.MemorySpace.VMEM),
    )(x_tm, params["wih0"], params["b0"], w_rec, params["b1"],
      params["fcw"], params["fcb"])

    return jnp.swapaxes(out_flat.reshape(T, B, O), 0, 1)   # (B, T, O)


def sequence_model_reference(x, params):
    """Pure-JAX reference (same math as nn.LSTM eval forward + Linear)."""
    B, T, _ = x.shape
    H = params["whh0"].shape[0]

    def lstm_layer(inp, wih, whh, b):
        def step(carry, x_t):
            h, c = carry
            gates = x_t @ wih + h @ whh + b[0]
            i = jax.nn.sigmoid(gates[:, 0 * H:1 * H])
            f = jax.nn.sigmoid(gates[:, 1 * H:2 * H])
            g = jnp.tanh(gates[:, 2 * H:3 * H])
            o = jax.nn.sigmoid(gates[:, 3 * H:4 * H])
            c = f * c + i * g
            h = o * jnp.tanh(c)
            return (h, c), h

        h0 = jnp.zeros((B, H), jnp.float32)
        (_, _), hs = jax.lax.scan(step, (h0, h0), jnp.transpose(inp, (1, 0, 2)))
        return jnp.transpose(hs, (1, 0, 2))

    h1 = lstm_layer(x, params["wih0"], params["whh0"], params["b0"])
    h2 = lstm_layer(h1, params["wih1"], params["whh1"], params["b1"])
    return h2 @ params["fcw"] + params["fcb"][0]


def init_params(key, input_size, hidden_size, output_size):
    """Deterministic init matching PyTorch parameter shapes.

    LSTM: weight_ih_l{k} (4H, in), weight_hh_l{k} (4H, H),
    bias_ih_l{k} + bias_hh_l{k} folded into a single (1, 4H) bias.
    Linear: weight (O, H), bias (O,). Uniform(-1/sqrt(H), 1/sqrt(H)).
    Weights are passed pre-transposed so the kernel does plain (M,D)@(D,N).
    """
    H = hidden_size
    k = 1.0 / jnp.sqrt(jnp.float32(H))
    keys = jax.random.split(key, 10)

    def u(kk, shape):
        return jax.random.uniform(kk, shape, jnp.float32, -k, k)

    w_ih0 = u(keys[0], (4 * H, input_size))
    w_hh0 = u(keys[1], (4 * H, H))
    b0 = u(keys[2], (4 * H,)) + u(keys[3], (4 * H,))
    w_ih1 = u(keys[4], (4 * H, H))
    w_hh1 = u(keys[5], (4 * H, H))
    b1 = u(keys[6], (4 * H,)) + u(keys[7], (4 * H,))
    fc_w = jax.random.uniform(keys[8], (output_size, H), jnp.float32, -k, k)
    fc_b = jax.random.uniform(keys[9], (output_size,), jnp.float32, -k, k)

    return {
        "wih0": w_ih0.T,                     # (D_in, 4H)
        "whh0": w_hh0.T,                     # (H, 4H)
        "b0": b0.reshape(1, 4 * H),
        "wih1": w_ih1.T,                     # (H, 4H)
        "whh1": w_hh1.T,                     # (H, 4H)
        "b1": b1.reshape(1, 4 * H),
        "fcw": fc_w.T,                       # (H, O)
        "fcb": fc_b.reshape(1, output_size),
    }


if __name__ == "__main__":
    # Small shapes consistent with the module: batch=2, seq=8, input=32,
    # hidden=32 (4H = 128 = one lane-width, 8H = 256 = one v6e/v7x MXU pass),
    # output=7, num_layers=2.
    B, T, D_in, H, O = 2, 8, 32, 32, 7

    key = jax.random.PRNGKey(0)
    k_x, k_p = jax.random.split(key)
    x = jax.random.normal(k_x, (B, T, D_in), jnp.float32)
    params = init_params(k_p, D_in, H, O)

    out = sequence_model_forward(x, params)
    out = jax.block_until_ready(out)
    assert out.shape == (B, T, O), out.shape

    ref = jax.block_until_ready(sequence_model_reference(x, params))
    max_err = float(jnp.max(jnp.abs(out - ref)))
    assert max_err < 1e-3, f"mismatch vs reference: max_err={max_err}"

    print("KERNEL_OK")
</pallas_src>

<mosaic_0001>
module attributes {stable_mosaic.version = 11 : i64} {
  func.func @lstm_fc_kernel(%arg0: memref<8x2x32xf32, #tpu.memory_space<vmem>>, %arg1: memref<32x128xf32, #tpu.memory_space<vmem>>, %arg2: memref<1x128xf32, #tpu.memory_space<vmem>>, %arg3: memref<64x256xf32, #tpu.memory_space<vmem>>, %arg4: memref<1x128xf32, #tpu.memory_space<vmem>>, %arg5: memref<32x7xf32, #tpu.memory_space<vmem>>, %arg6: memref<1x7xf32, #tpu.memory_space<vmem>>, %arg7: memref<16x7xf32, #tpu.memory_space<vmem>>) attributes {dimension_semantics = [], scalar_prefetch = 0 : i64, scratch_operands = 0 : i64, tpu.core_type = #tpu.core_type<tc>} {
    %c0 = arith.constant 0 : index
    %c0_0 = arith.constant 0 : index
    %c0_1 = arith.constant 0 : index
    %0 = vector.load %arg0[%c0, %c0_0, %c0_1] : memref<8x2x32xf32, #tpu.memory_space<vmem>>, vector<8x2x32xf32>
    %1 = vector.shape_cast %0 : vector<8x2x32xf32> to vector<16x32xf32>
    %c0_2 = arith.constant 0 : index
    %c0_3 = arith.constant 0 : index
    %2 = vector.load %arg1[%c0_2, %c0_3] : memref<32x128xf32, #tpu.memory_space<vmem>>, vector<32x128xf32>
    %cst = arith.constant dense<0.000000e+00> : vector<16x128xf32>
    %3 = tpu.matmul %1, %2, %cst {dimension_numbers = #tpu.dot_dimension_numbers<[1], [0], [0], [1], [0, 0, 1, 1], [], []>} : vector<16x32xf32>, vector<32x128xf32>, vector<16x128xf32> -> vector<16x128xf32>
    %c0_4 = arith.constant 0 : index
    %c0_5 = arith.constant 0 : index
    %4 = vector.load %arg2[%c0_4, %c0_5] : memref<1x128xf32, #tpu.memory_space<vmem>>, vector<1x128xf32>
    %5 = vector.broadcast %4 : vector<1x128xf32> to vector<16x128xf32>
    %6 = arith.addf %3, %5 : vector<16x128xf32>
    %c0_6 = arith.constant 0 : index
    %c0_7 = arith.constant 0 : index
    %7 = vector.load %arg3[%c0_6, %c0_7] : memref<64x256xf32, #tpu.memory_space<vmem>>, vector<64x256xf32>
    %c0_8 = arith.constant 0 : index
    %c0_9 = arith.constant 0 : index
    %8 = vector.load %arg4[%c0_8, %c0_9] : memref<1x128xf32, #tpu.memory_space<vmem>>, vector<1x128xf32>
    %cst_10 = arith.constant 0.000000e+00 : f32
    %9 = vector.broadcast %cst_10 : f32 to vector<2x32xf32>
    %10 = vector.extract_strided_slice %6 {offsets = [0, 0], sizes = [2, 128], strides = [1, 1]} : vector<16x128xf32> to vector<2x128xf32>
    %11 = arith.negf %10 : vector<2x128xf32>
    %12 = math.exp %11 : vector<2x128xf32>
    %cst_11 = arith.constant 1.000000e+00 : f32
    %13 = vector.broadcast %cst_11 : f32 to vector<2x128xf32>
    %14 = arith.addf %13, %12 : vector<2x128xf32>
    %15 = arith.divf %13, %14 : vector<2x128xf32>
    %16 = vector.extract_strided_slice %10 {offsets = [0, 64], sizes = [2, 32], strides = [1, 1]} : vector<2x128xf32> to vector<2x32xf32>
    %17 = math.tanh %16 : vector<2x32xf32>
    %18 = vector.extract_strided_slice %15 {offsets = [0, 0], sizes = [2, 32], strides = [1, 1]} : vector<2x128xf32> to vector<2x32xf32>
    %19 = vector.extract_strided_slice %15 {offsets = [0, 32], sizes = [2, 32], strides = [1, 1]} : vector<2x128xf32> to vector<2x32xf32>
    %20 = vector.extract_strided_slice %15 {offsets = [0, 96], sizes = [2, 32], strides = [1, 1]} : vector<2x128xf32> to vector<2x32xf32>
    %21 = arith.mulf %19, %9 : vector<2x32xf32>
    %22 = arith.mulf %18, %17 : vector<2x32xf32>
    %23 = arith.addf %21, %22 : vector<2x32xf32>
    %24 = math.tanh %23 : vector<2x32xf32>
    %25 = arith.mulf %20, %24 : vector<2x32xf32>
    %26 = tpu.concatenate %25, %9 in 1 : vector<2x32xf32>, vector<2x32xf32> -> vector<2x64xf32>
    %cst_12 = arith.constant dense<0.000000e+00> : vector<2x256xf32>
    %27 = tpu.matmul %26, %7, %cst_12 {dimension_numbers = #tpu.dot_dimension_numbers<[1], [0], [0], [1], [0, 0, 1, 1], [], []>} : vector<2x64xf32>, vector<64x256xf32>, vector<2x256xf32> -> vector<2x256xf32>
    %28 = vector.extract_strided_slice %27 {offsets = [0, 128], sizes = [2, 128], strides = [1, 1]} : vector<2x256xf32> to vector<2x128xf32>
    %29 = vector.broadcast %8 : vector<1x128xf32> to vector<2x128xf32>
    %30 = arith.addf %28, %29 : vector<2x128xf32>
    %31 = arith.negf %30 : vector<2x128xf32>
    %32 = math.exp %31 : vector<2x128xf32>
    %cst_13 = arith.constant 1.000000e+00 : f32
    %33 = vector.broadcast %cst_13 : f32 to vector<2x128xf32>
    %34 = arith.addf %33, %32 : vector<2x128xf32>
    %35 = arith.divf %33, %34 : vector<2x128xf32>
    %36 = vector.extract_strided_slice %30 {offsets = [0, 64], sizes = [2, 32], strides = [1, 1]} : vector<2x128xf32> to vector<2x32xf32>
    %37 = math.tanh %36 : vector<2x32xf32>
    %38 = vector.extract_strided_slice %35 {offsets = [0, 0], sizes = [2, 32], strides = [1, 1]} : vector<2x128xf32> to vector<2x32xf32>
    %39 = vector.extract_strided_slice %35 {offsets = [0, 32], sizes = [2, 32], strides = [1, 1]} : vector<2x128xf32> to vector<2x32xf32>
    %40 = vector.extract_strided_slice %35 {offsets = [0, 96], sizes = [2, 32], strides = [1, 1]} : vector<2x128xf32> to vector<2x32xf32>
    %41 = arith.mulf %39, %9 : vector<2x32xf32>
    %42 = arith.mulf %38, %37 : vector<2x32xf32>
    %43 = arith.addf %41, %42 : vector<2x32xf32>
    %44 = math.tanh %43 : vector<2x32xf32>
    %45 = arith.mulf %40, %44 : vector<2x32xf32>
    %46 = vector.extract_strided_slice %6 {offsets = [2, 0], sizes = [2, 128], strides = [1, 1]} : vector<16x128xf32> to vector<2x128xf32>
    %47 = vector.extract_strided_slice %27 {offsets = [0, 0], sizes = [2, 128], strides = [1, 1]} : vector<2x256xf32> to vector<2x128xf32>
    %48 = arith.addf %46, %47 : vector<2x128xf32>
    %49 = arith.negf %48 : vector<2x128xf32>
    %50 = math.exp %49 : vector<2x128xf32>
    %cst_14 = arith.constant 1.000000e+00 : f32
    %51 = vector.broadcast %cst_14 : f32 to vector<2x128xf32>
    %52 = arith.addf %51, %50 : vector<2x128xf32>
    %53 = arith.divf %51, %52 : vector<2x128xf32>
    %54 = vector.extract_strided_slice %48 {offsets = [0, 64], sizes = [2, 32], strides = [1, 1]} : vector<2x128xf32> to vector<2x32xf32>
    %55 = math.tanh %54 : vector<2x32xf32>
    %56 = vector.extract_strided_slice %53 {offsets = [0, 0], sizes = [2, 32], strides = [1, 1]} : vector<2x128xf32> to vector<2x32xf32>
    %57 = vector.extract_strided_slice %53 {offsets = [0, 32], sizes = [2, 32], strides = [1, 1]} : vector<2x128xf32> to vector<2x32xf32>
    %58 = vector.extract_strided_slice %53 {offsets = [0, 96], sizes = [2, 32], strides = [1, 1]} : vector<2x128xf32> to vector<2x32xf32>
    %59 = arith.mulf %57, %23 : vector<2x32xf32>
    %60 = arith.mulf %56, %55 : vector<2x32xf32>
    %61 = arith.addf %59, %60 : vector<2x32xf32>
    %62 = math.tanh %61 : vector<2x32xf32>
    %63 = arith.mulf %58, %62 : vector<2x32xf32>
    %64 = tpu.concatenate %63, %45 in 1 : vector<2x32xf32>, vector<2x32xf32> -> vector<2x64xf32>
    %cst_15 = arith.constant dense<0.000000e+00> : vector<2x256xf32>
    %65 = tpu.matmul %64, %7, %cst_15 {dimension_numbers = #tpu.dot_dimension_numbers<[1], [0], [0], [1], [0, 0, 1, 1], [], []>} : vector<2x64xf32>, vector<64x256xf32>, vector<2x256xf32> -> vector<2x256xf32>
    %66 = vector.extract_strided_slice %65 {offsets = [0, 128], sizes = [2, 128], strides = [1, 1]} : vector<2x256xf32> to vector<2x128xf32>
    %67 = vector.broadcast %8 : vector<1x128xf32> to vector<2x128xf32>
    %68 = arith.addf %66, %67 : vector<2x128xf32>
    %69 = arith.negf %68 : vector<2x128xf32>
    %70 = math.exp %69 : vector<2x128xf32>
    %cst_16 = arith.constant 1.000000e+00 : f32
    %71 = vector.broadcast %cst_16 : f32 to vector<2x128xf32>
    %72 = arith.addf %71, %70 : vector<2x128xf32>
    %73 = arith.divf %71, %72 : vector<2x128xf32>
    %74 = vector.extract_strided_slice %68 {offsets = [0, 64], sizes = [2, 32], strides = [1, 1]} : vector<2x128xf32> to vector<2x32xf32>
    %75 = math.tanh %74 : vector<2x32xf32>
    %76 = vector.extract_strided_slice %73 {offsets = [0, 0], sizes = [2, 32], strides = [1, 1]} : vector<2x128xf32> to vector<2x32xf32>
    %77 = vector.extract_strided_slice %73 {offsets = [0, 32], sizes = [2, 32], strides = [1, 1]} : vector<2x128xf32> to vector<2x32xf32>
    %78 = vector.extract_strided_slice %73 {offsets = [0, 96], sizes = [2, 32], strides = [1, 1]} : vector<2x128xf32> to vector<2x32xf32>
    %79 = arith.mulf %77, %43 : vector<2x32xf32>
    %80 = arith.mulf %76, %75 : vector<2x32xf32>
    %81 = arith.addf %79, %80 : vector<2x32xf32>
    %82 = math.tanh %81 : vector<2x32xf32>
    %83 = arith.mulf %78, %82 : vector<2x32xf32>
    %84 = vector.extract_strided_slice %6 {offsets = [4, 0], sizes = [2, 128], strides = [1, 1]} : vector<16x128xf32> to vector<2x128xf32>
    %85 = vector.extract_strided_slice %65 {offsets = [0, 0], sizes = [2, 128], strides = [1, 1]} : vector<2x256xf32> to vector<2x128xf32>
    %86 = arith.addf %84, %85 : vector<2x128xf32>
    %87 = arith.negf %86 : vector<2x128xf32>
    %88 = math.exp %87 : vector<2x128xf32>
    %cst_17 = arith.constant 1.000000e+00 : f32
    %89 = vector.broadcast %cst_17 : f32 to vector<2x128xf32>
    %90 = arith.addf %89, %88 : vector<2x128xf32>
    %91 = arith.divf %89, %90 : vector<2x128xf32>
    %92 = vector.extract_strided_slice %86 {offsets = [0, 64], sizes = [2, 32], strides = [1, 1]} : vector<2x128xf32> to vector<2x32xf32>
    %93 = math.tanh %92 : vector<2x32xf32>
    %94 = vector.extract_strided_slice %91 {offsets = [0, 0], sizes = [2, 32], strides = [1, 1]} : vector<2x128xf32> to vector<2x32xf32>
    %95 = vector.extract_strided_slice %91 {offsets = [0, 32], sizes = [2, 32], strides = [1, 1]} : vector<2x128xf32> to vector<2x32xf32>
    %96 = vector.extract_strided_slice %91 {offsets = [0, 96], sizes = [2, 32], strides = [1, 1]} : vector<2x128xf32> to vector<2x32xf32>
    %97 = arith.mulf %95, %61 : vector<2x32xf32>
    %98 = arith.mulf %94, %93 : vector<2x32xf32>
    %99 = arith.addf %97, %98 : vector<2x32xf32>
    %100 = math.tanh %99 : vector<2x32xf32>
    %101 = arith.mulf %96, %100 : vector<2x32xf32>
    %102 = tpu.concatenate %101, %83 in 1 : vector<2x32xf32>, vector<2x32xf32> -> vector<2x64xf32>
    %cst_18 = arith.constant dense<0.000000e+00> : vector<2x256xf32>
    %103 = tpu.matmul %102, %7, %cst_18 {dimension_numbers = #tpu.dot_dimension_numbers<[1], [0], [0], [1], [0, 0, 1, 1], [], []>} : vector<2x64xf32>, vector<64x256xf32>, vector<2x256xf32> -> vector<2x256xf32>
    %104 = vector.extract_strided_slice %103 {offsets = [0, 128], sizes = [2, 128], strides = [1, 1]} : vector<2x256xf32> to vector<2x128xf32>
    %105 = vector.broadcast %8 : vector<1x128xf32> to vector<2x128xf32>
    %106 = arith.addf %104, %105 : vector<2x128xf32>
    %107 = arith.negf %106 : vector<2x128xf32>
    %108 = math.exp %107 : vector<2x128xf32>
    %cst_19 = arith.constant 1.000000e+00 : f32
    %109 = vector.broadcast %cst_19 : f32 to vector<2x128xf32>
    %110 = arith.addf %109, %108 : vector<2x128xf32>
    %111 = arith.divf %109, %110 : vector<2x128xf32>
    %112 = vector.extract_strided_slice %106 {offsets = [0, 64], sizes = [2, 32], strides = [1, 1]} : vector<2x128xf32> to vector<2x32xf32>
    %113 = math.tanh %112 : vector<2x32xf32>
    %114 = vector.extract_strided_slice %111 {offsets = [0, 0], sizes = [2, 32], strides = [1, 1]} : vector<2x128xf32> to vector<2x32xf32>
    %115 = vector.extract_strided_slice %111 {offsets = [0, 32], sizes = [2, 32], strides = [1, 1]} : vector<2x128xf32> to vector<2x32xf32>
    %116 = vector.extract_strided_slice %111 {offsets = [0, 96], sizes = [2, 32], strides = [1, 1]} : vector<2x128xf32> to vector<2x32xf32>
    %117 = arith.mulf %115, %81 : vector<2x32xf32>
    %118 = arith.mulf %114, %113 : vector<2x32xf32>
    %119 = arith.addf %117, %118 : vector<2x32xf32>
    %120 = math.tanh %119 : vector<2x32xf32>
    %121 = arith.mulf %116, %120 : vector<2x32xf32>
    %122 = vector.extract_strided_slice %6 {offsets = [6, 0], sizes = [2, 128], strides = [1, 1]} : vector<16x128xf32> to vector<2x128xf32>
    %123 = vector.extract_strided_slice %103 {offsets = [0, 0], sizes = [2, 128], strides = [1, 1]} : vector<2x256xf32> to vector<2x128xf32>
    %124 = arith.addf %122, %123 : vector<2x128xf32>
    %125 = arith.negf %124 : vector<2x128xf32>
    %126 = math.exp %125 : vector<2x128xf32>
    %cst_20 = arith.constant 1.000000e+00 : f32
    %127 = vector.broadcast %cst_20 : f32 to vector<2x128xf32>
    %128 = arith.addf %127, %126 : vector<2x128xf32>
    %129 = arith.divf %127, %128 : vector<2x128xf32>
    %130 = vector.extract_strided_slice %124 {offsets = [0, 64], sizes = [2, 32], strides = [1, 1]} : vector<2x128xf32> to vector<2x32xf32>
    %131 = math.tanh %130 : vector<2x32xf32>
    %132 = vector.extract_strided_slice %129 {offsets = [0, 0], sizes = [2, 32], strides = [1, 1]} : vector<2x128xf32> to vector<2x32xf32>
    %133 = vector.extract_strided_slice %129 {offsets = [0, 32], sizes = [2, 32], strides = [1, 1]} : vector<2x128xf32> to vector<2x32xf32>
    %134 = vector.extract_strided_slice %129 {offsets = [0, 96], sizes = [2, 32], strides = [1, 1]} : vector<2x128xf32> to vector<2x32xf32>
    %135 = arith.mulf %133, %99 : vector<2x32xf32>
    %136 = arith.mulf %132, %131 : vector<2x32xf32>
    %137 = arith.addf %135, %136 : vector<2x32xf32>
    %138 = math.tanh %137 : vector<2x32xf32>
    %139 = arith.mulf %134, %138 : vector<2x32xf32>
    %140 = tpu.concatenate %139, %121 in 1 : vector<2x32xf32>, vector<2x32xf32> -> vector<2x64xf32>
    %cst_21 = arith.constant dense<0.000000e+00> : vector<2x256xf32>
    %141 = tpu.matmul %140, %7, %cst_21 {dimension_numbers = #tpu.dot_dimension_numbers<[1], [0], [0], [1], [0, 0, 1, 1], [], []>} : vector<2x64xf32>, vector<64x256xf32>, vector<2x256xf32> -> vector<2x256xf32>
    %142 = vector.extract_strided_slice %141 {offsets = [0, 128], sizes = [2, 128], strides = [1, 1]} : vector<2x256xf32> to vector<2x128xf32>
    %143 = vector.broadcast %8 : vector<1x128xf32> to vector<2x128xf32>
    %144 = arith.addf %142, %143 : vector<2x128xf32>
    %145 = arith.negf %144 : vector<2x128xf32>
    %146 = math.exp %145 : vector<2x128xf32>
    %cst_22 = arith.constant 1.000000e+00 : f32
    %147 = vector.broadcast %cst_22 : f32 to vector<2x128xf32>
    %148 = arith.addf %147, %146 : vector<2x128xf32>
    %149 = arith.divf %147, %148 : vector<2x128xf32>
    %150 = vector.extract_strided_slice %144 {offsets = [0, 64], sizes = [2, 32], strides = [1, 1]} : vector<2x128xf32> to vector<2x32xf32>
    %151 = math.tanh %150 : vector<2x32xf32>
    %152 = vector.extract_strided_slice %149 {offsets = [0, 0], sizes = [2, 32], strides = [1, 1]} : vector<2x128xf32> to vector<2x32xf32>
    %153 = vector.extract_strided_slice %149 {offsets = [0, 32], sizes = [2, 32], strides = [1, 1]} : vector<2x128xf32> to vector<2x32xf32>
    %154 = vector.extract_strided_slice %149 {offsets = [0, 96], sizes = [2, 32], strides = [1, 1]} : vector<2x128xf32> to vector<2x32xf32>
    %155 = arith.mulf %153, %119 : vector<2x32xf32>
    %156 = arith.mulf %152, %151 : vector<2x32xf32>
    %157 = arith.addf %155, %156 : vector<2x32xf32>
    %158 = math.tanh %157 : vector<2x32xf32>
    %159 = arith.mulf %154, %158 : vector<2x32xf32>
    %160 = vector.extract_strided_slice %6 {offsets = [8, 0], sizes = [2, 128], strides = [1, 1]} : vector<16x128xf32> to vector<2x128xf32>
    %161 = vector.extract_strided_slice %141 {offsets = [0, 0], sizes = [2, 128], strides = [1, 1]} : vector<2x256xf32> to vector<2x128xf32>
    %162 = arith.addf %160, %161 : vector<2x128xf32>
    %163 = arith.negf %162 : vector<2x128xf32>
    %164 = math.exp %163 : vector<2x128xf32>
    %cst_23 = arith.constant 1.000000e+00 : f32
    %165 = vector.broadcast %cst_23 : f32 to vector<2x128xf32>
    %166 = arith.addf %165, %164 : vector<2x128xf32>
    %167 = arith.divf %165, %166 : vector<2x128xf32>
    %168 = vector.extract_strided_slice %162 {offsets = [0, 64], sizes = [2, 32], strides = [1, 1]} : vector<2x128xf32> to vector<2x32xf32>
    %169 = math.tanh %168 : vector<2x32xf32>
    %170 = vector.extract_strided_slice %167 {offsets = [0, 0], sizes = [2, 32], strides = [1, 1]} : vector<2x128xf32> to vector<2x32xf32>
    %171 = vector.extract_strided_slice %167 {offsets = [0, 32], sizes = [2, 32], strides = [1, 1]} : vector<2x128xf32> to vector<2x32xf32>
    %172 = vector.extract_strided_slice %167 {offsets = [0, 96], sizes = [2, 32], strides = [1, 1]} : vector<2x128xf32> to vector<2x32xf32>
    %173 = arith.mulf %171, %137 : vector<2x32xf32>
    %174 = arith.mulf %170, %169 : vector<2x32xf32>
    %175 = arith.addf %173, %174 : vector<2x32xf32>
    %176 = math.tanh %175 : vector<2x32xf32>
    %177 = arith.mulf %172, %176 : vector<2x32xf32>
    %178 = tpu.concatenate %177, %159 in 1 : vector<2x32xf32>, vector<2x32xf32> -> vector<2x64xf32>
    %cst_24 = arith.constant dense<0.000000e+00> : vector<2x256xf32>
    %179 = tpu.matmul %178, %7, %cst_24 {dimension_numbers = #tpu.dot_dimension_numbers<[1], [0], [0], [1], [0, 0, 1, 1], [], []>} : vector<2x64xf32>, vector<64x256xf32>, vector<2x256xf32> -> vector<2x256xf32>
    %180 = vector.extract_strided_slice %179 {offsets = [0, 128], sizes = [2, 128], strides = [1, 1]} : vector<2x256xf32> to vector<2x128xf32>
    %181 = vector.broadcast %8 : vector<1x128xf32> to vector<2x128xf32>
    %182 = arith.addf %180, %181 : vector<2x128xf32>
    %183 = arith.negf %182 : vector<2x128xf32>
    %184 = math.exp %183 : vector<2x128xf32>
    %cst_25 = arith.constant 1.000000e+00 : f32
    %185 = vector.broadcast %cst_25 : f32 to vector<2x128xf32>
    %186 = arith.addf %185, %184 : vector<2x128xf32>
    %187 = arith.divf %185, %186 : vector<2x128xf32>
    %188 = vector.extract_strided_slice %182 {offsets = [0, 64], sizes = [2, 32], strides = [1, 1]} : vector<2x128xf32> to vector<2x32xf32>
    %189 = math.tanh %188 : vector<2x32xf32>
    %190 = vector.extract_strided_slice %187 {offsets = [0, 0], sizes = [2, 32], strides = [1, 1]} : vector<2x128xf32> to vector<2x32xf32>
    %191 = vector.extract_strided_slice %187 {offsets = [0, 32], sizes = [2, 32], strides = [1, 1]} : vector<2x128xf32> to vector<2x32xf32>
    %192 = vector.extract_strided_slice %187 {offsets = [0, 96], sizes = [2, 32], strides = [1, 1]} : vector<2x128xf32> to vector<2x32xf32>
    %193 = arith.mulf %191, %157 : vector<2x32xf32>
    %194 = arith.mulf %190, %189 : vector<2x32xf32>
    %195 = arith.addf %193, %194 : vector<2x32xf32>
    %196 = math.tanh %195 : vector<2x32xf32>
    %197 = arith.mulf %192, %196 : vector<2x32xf32>
    %198 = vector.extract_strided_slice %6 {offsets = [10, 0], sizes = [2, 128], strides = [1, 1]} : vector<16x128xf32> to vector<2x128xf32>
    %199 = vector.extract_strided_slice %179 {offsets = [0, 0], sizes = [2, 128], strides = [1, 1]} : vector<2x256xf32> to vector<2x128xf32>
    %200 = arith.addf %198, %199 : vector<2x128xf32>
    %201 = arith.negf %200 : vector<2x128xf32>
    %202 = math.exp %201 : vector<2x128xf32>
    %cst_26 = arith.constant 1.000000e+00 : f32
    %203 = vector.broadcast %cst_26 : f32 to vector<2x128xf32>
    %204 = arith.addf %203, %202 : vector<2x128xf32>
    %205 = arith.divf %203, %204 : vector<2x128xf32>
    %206 = vector.extract_strided_slice %200 {offsets = [0, 64], sizes = [2, 32], strides = [1, 1]} : vector<2x128xf32> to vector<2x32xf32>
    %207 = math.tanh %206 : vector<2x32xf32>
    %208 = vector.extract_strided_slice %205 {offsets = [0, 0], sizes = [2, 32], strides = [1, 1]} : vector<2x128xf32> to vector<2x32xf32>
    %209 = vector.extract_strided_slice %205 {offsets = [0, 32], sizes = [2, 32], strides = [1, 1]} : vector<2x128xf32> to vector<2x32xf32>
    %210 = vector.extract_strided_slice %205 {offsets = [0, 96], sizes = [2, 32], strides = [1, 1]} : vector<2x128xf32> to vector<2x32xf32>
    %211 = arith.mulf %209, %175 : vector<2x32xf32>
    %212 = arith.mulf %208, %207 : vector<2x32xf32>
    %213 = arith.addf %211, %212 : vector<2x32xf32>
    %214 = math.tanh %213 : vector<2x32xf32>
    %215 = arith.mulf %210, %214 : vector<2x32xf32>
    %216 = tpu.concatenate %215, %197 in 1 : vector<2x32xf32>, vector<2x32xf32> -> vector<2x64xf32>
    %cst_27 = arith.constant dense<0.000000e+00> : vector<2x256xf32>
    %217 = tpu.matmul %216, %7, %cst_27 {dimension_numbers = #tpu.dot_dimension_numbers<[1], [0], [0], [1], [0, 0, 1, 1], [], []>} : vector<2x64xf32>, vector<64x256xf32>, vector<2x256xf32> -> vector<2x256xf32>
    %218 = vector.extract_strided_slice %217 {offsets = [0, 128], sizes = [2, 128], strides = [1, 1]} : vector<2x256xf32> to vector<2x128xf32>
    %219 = vector.broadcast %8 : vector<1x128xf32> to vector<2x128xf32>
    %220 = arith.addf %218, %219 : vector<2x128xf32>
    %221 = arith.negf %220 : vector<2x128xf32>
    %222 = math.exp %221 : vector<2x128xf32>
    %cst_28 = arith.constant 1.000000e+00 : f32
    %223 = vector.broadcast %cst_28 : f32 to vector<2x128xf32>
    %224 = arith.addf %223, %222 : vector<2x128xf32>
    %225 = arith.divf %223, %224 : vector<2x128xf32>
    %226 = vector.extract_strided_slice %220 {offsets = [0, 64], sizes = [2, 32], strides = [1, 1]} : vector<2x128xf32> to vector<2x32xf32>
    %227 = math.tanh %226 : vector<2x32xf32>
    %228 = vector.extract_strided_slice %225 {offsets = [0, 0], sizes = [2, 32], strides = [1, 1]} : vector<2x128xf32> to vector<2x32xf32>
    %229 = vector.extract_strided_slice %225 {offsets = [0, 32], sizes = [2, 32], strides = [1, 1]} : vector<2x128xf32> to vector<2x32xf32>
    %230 = vector.extract_strided_slice %225 {offsets = [0, 96], sizes = [2, 32], strides = [1, 1]} : vector<2x128xf32> to vector<2x32xf32>
    %231 = arith.mulf %229, %195 : vector<2x32xf32>
    %232 = arith.mulf %228, %227 : vector<2x32xf32>
    %233 = arith.addf %231, %232 : vector<2x32xf32>
    %234 = math.tanh %233 : vector<2x32xf32>
    %235 = arith.mulf %230, %234 : vector<2x32xf32>
    %236 = vector.extract_strided_slice %6 {offsets = [12, 0], sizes = [2, 128], strides = [1, 1]} : vector<16x128xf32> to vector<2x128xf32>
    %237 = vector.extract_strided_slice %217 {offsets = [0, 0], sizes = [2, 128], strides = [1, 1]} : vector<2x256xf32> to vector<2x128xf32>
    %238 = arith.addf %236, %237 : vector<2x128xf32>
    %239 = arith.negf %238 : vector<2x128xf32>
    %240 = math.exp %239 : vector<2x128xf32>
    %cst_29 = arith.constant 1.000000e+00 : f32
    %241 = vector.broadcast %cst_29 : f32 to vector<2x128xf32>
    %242 = arith.addf %241, %240 : vector<2x128xf32>
    %243 = arith.divf %241, %242 : vector<2x128xf32>
    %244 = vector.extract_strided_slice %238 {offsets = [0, 64], sizes = [2, 32], strides = [1, 1]} : vector<2x128xf32> to vector<2x32xf32>
    %245 = math.tanh %244 : vector<2x32xf32>
    %246 = vector.extract_strided_slice %243 {offsets = [0, 0], sizes = [2, 32], strides = [1, 1]} : vector<2x128xf32> to vector<2x32xf32>
    %247 = vector.extract_strided_slice %243 {offsets = [0, 32], sizes = [2, 32], strides = [1, 1]} : vector<2x128xf32> to vector<2x32xf32>
    %248 = vector.extract_strided_slice %243 {offsets = [0, 96], sizes = [2, 32], strides = [1, 1]} : vector<2x128xf32> to vector<2x32xf32>
    %249 = arith.mulf %247, %213 : vector<2x32xf32>
    %250 = arith.mulf %246, %245 : vector<2x32xf32>
    %251 = arith.addf %249, %250 : vector<2x32xf32>
    %252 = math.tanh %251 : vector<2x32xf32>
    %253 = arith.mulf %248, %252 : vector<2x32xf32>
    %254 = tpu.concatenate %253, %235 in 1 : vector<2x32xf32>, vector<2x32xf32> -> vector<2x64xf32>
    %cst_30 = arith.constant dense<0.000000e+00> : vector<2x256xf32>
    %255 = tpu.matmul %254, %7, %cst_30 {dimension_numbers = #tpu.dot_dimension_numbers<[1], [0], [0], [1], [0, 0, 1, 1], [], []>} : vector<2x64xf32>, vector<64x256xf32>, vector<2x256xf32> -> vector<2x256xf32>
    %256 = vector.extract_strided_slice %255 {offsets = [0, 128], sizes = [2, 128], strides = [1, 1]} : vector<2x256xf32> to vector<2x128xf32>
    %257 = vector.broadcast %8 : vector<1x128xf32> to vector<2x128xf32>
    %258 = arith.addf %256, %257 : vector<2x128xf32>
    %259 = arith.negf %258 : vector<2x128xf32>
    %260 = math.exp %259 : vector<2x128xf32>
    %cst_31 = arith.constant 1.000000e+00 : f32
    %261 = vector.broadcast %cst_31 : f32 to vector<2x128xf32>
    %262 = arith.addf %261, %260 : vector<2x128xf32>
    %263 = arith.divf %261, %262 : vector<2x128xf32>
    %264 = vector.extract_strided_slice %258 {offsets = [0, 64], sizes = [2, 32], strides = [1, 1]} : vector<2x128xf32> to vector<2x32xf32>
    %265 = math.tanh %264 : vector<2x32xf32>
    %266 = vector.extract_strided_slice %263 {offsets = [0, 0], sizes = [2, 32], strides = [1, 1]} : vector<2x128xf32> to vector<2x32xf32>
    %267 = vector.extract_strided_slice %263 {offsets = [0, 32], sizes = [2, 32], strides = [1, 1]} : vector<2x128xf32> to vector<2x32xf32>
    %268 = vector.extract_strided_slice %263 {offsets = [0, 96], sizes = [2, 32], strides = [1, 1]} : vector<2x128xf32> to vector<2x32xf32>
    %269 = arith.mulf %267, %233 : vector<2x32xf32>
    %270 = arith.mulf %266, %265 : vector<2x32xf32>
    %271 = arith.addf %269, %270 : vector<2x32xf32>
    %272 = math.tanh %271 : vector<2x32xf32>
    %273 = arith.mulf %268, %272 : vector<2x32xf32>
    %274 = vector.extract_strided_slice %6 {offsets = [14, 0], sizes = [2, 128], strides = [1, 1]} : vector<16x128xf32> to vector<2x128xf32>
    %275 = vector.extract_strided_slice %255 {offsets = [0, 0], sizes = [2, 128], strides = [1, 1]} : vector<2x256xf32> to vector<2x128xf32>
    %276 = arith.addf %274, %275 : vector<2x128xf32>
    %277 = arith.negf %276 : vector<2x128xf32>
    %278 = math.exp %277 : vector<2x128xf32>
    %cst_32 = arith.constant 1.000000e+00 : f32
    %279 = vector.broadcast %cst_32 : f32 to vector<2x128xf32>
    %280 = arith.addf %279, %278 : vector<2x128xf32>
    %281 = arith.divf %279, %280 : vector<2x128xf32>
    %282 = vector.extract_strided_slice %276 {offsets = [0, 64], sizes = [2, 32], strides = [1, 1]} : vector<2x128xf32> to vector<2x32xf32>
    %283 = math.tanh %282 : vector<2x32xf32>
    %284 = vector.extract_strided_slice %281 {offsets = [0, 0], sizes = [2, 32], strides = [1, 1]} : vector<2x128xf32> to vector<2x32xf32>
    %285 = vector.extract_strided_slice %281 {offsets = [0, 32], sizes = [2, 32], strides = [1, 1]} : vector<2x128xf32> to vector<2x32xf32>
    %286 = vector.extract_strided_slice %281 {offsets = [0, 96], sizes = [2, 32], strides = [1, 1]} : vector<2x128xf32> to vector<2x32xf32>
    %287 = arith.mulf %285, %251 : vector<2x32xf32>
    %288 = arith.mulf %284, %283 : vector<2x32xf32>
    %289 = arith.addf %287, %288 : vector<2x32xf32>
    %290 = math.tanh %289 : vector<2x32xf32>
    %291 = arith.mulf %286, %290 : vector<2x32xf32>
    %292 = tpu.concatenate %291, %273 in 1 : vector<2x32xf32>, vector<2x32xf32> -> vector<2x64xf32>
    %cst_33 = arith.constant dense<0.000000e+00> : vector<2x256xf32>
    %293 = tpu.matmul %292, %7, %cst_33 {dimension_numbers = #tpu.dot_dimension_numbers<[1], [0], [0], [1], [0, 0, 1, 1], [], []>} : vector<2x64xf32>, vector<64x256xf32>, vector<2x256xf32> -> vector<2x256xf32>
    %294 = vector.extract_strided_slice %293 {offsets = [0, 128], sizes = [2, 128], strides = [1, 1]} : vector<2x256xf32> to vector<2x128xf32>
    %295 = vector.broadcast %8 : vector<1x128xf32> to vector<2x128xf32>
    %296 = arith.addf %294, %295 : vector<2x128xf32>
    %297 = arith.negf %296 : vector<2x128xf32>
    %298 = math.exp %297 : vector<2x128xf32>
    %cst_34 = arith.constant 1.000000e+00 : f32
    %299 = vector.broadcast %cst_34 : f32 to vector<2x128xf32>
    %300 = arith.addf %299, %298 : vector<2x128xf32>
    %301 = arith.divf %299, %300 : vector<2x128xf32>
    %302 = vector.extract_strided_slice %296 {offsets = [0, 64], sizes = [2, 32], strides = [1, 1]} : vector<2x128xf32> to vector<2x32xf32>
    %303 = math.tanh %302 : vector<2x32xf32>
    %304 = vector.extract_strided_slice %301 {offsets = [0, 0], sizes = [2, 32], strides = [1, 1]} : vector<2x128xf32> to vector<2x32xf32>
    %305 = vector.extract_strided_slice %301 {offsets = [0, 32], sizes = [2, 32], strides = [1, 1]} : vector<2x128xf32> to vector<2x32xf32>
    %306 = vector.extract_strided_slice %301 {offsets = [0, 96], sizes = [2, 32], strides = [1, 1]} : vector<2x128xf32> to vector<2x32xf32>
    %307 = arith.mulf %305, %271 : vector<2x32xf32>
    %308 = arith.mulf %304, %303 : vector<2x32xf32>
    %309 = arith.addf %307, %308 : vector<2x32xf32>
    %310 = math.tanh %309 : vector<2x32xf32>
    %311 = arith.mulf %306, %310 : vector<2x32xf32>
    %312 = tpu.concatenate %45, %83, %121, %159, %197, %235, %273, %311 in 0 : vector<2x32xf32>, vector<2x32xf32>, vector<2x32xf32>, vector<2x32xf32>, vector<2x32xf32>, vector<2x32xf32>, vector<2x32xf32>, vector<2x32xf32> -> vector<16x32xf32>
    %c0_35 = arith.constant 0 : index
    %c0_36 = arith.constant 0 : index
    %313 = vector.load %arg5[%c0_35, %c0_36] : memref<32x7xf32, #tpu.memory_space<vmem>>, vector<32x7xf32>
    %cst_37 = arith.constant dense<0.000000e+00> : vector<16x7xf32>
    %314 = tpu.matmul %312, %313, %cst_37 {dimension_numbers = #tpu.dot_dimension_numbers<[1], [0], [0], [1], [0, 0, 1, 1], [], []>} : vector<16x32xf32>, vector<32x7xf32>, vector<16x7xf32> -> vector<16x7xf32>
    %c0_38 = arith.constant 0 : index
    %c0_39 = arith.constant 0 : index
    %315 = vector.load %arg6[%c0_38, %c0_39] : memref<1x7xf32, #tpu.memory_space<vmem>>, vector<1x7xf32>
    %316 = vector.broadcast %315 : vector<1x7xf32> to vector<16x7xf32>
    %317 = arith.addf %314, %316 : vector<16x7xf32>
    %c0_40 = arith.constant 0 : index
    %c0_41 = arith.constant 0 : index
    %318 = vector.load %arg7[%c0_40, %c0_41] : memref<16x7xf32, #tpu.memory_space<vmem>>, vector<16x7xf32>
    tpu.vector_store %arg7[%c0_40, %c0_41], %317 {strides = array<i32>} : memref<16x7xf32, #tpu.memory_space<vmem>>, vector<16x7xf32>,
    return
  }
}

</mosaic_0001>

<llo_original>
// kernel: tpu_custom_call.1
$region0: #{tpu_custom_call.1}
  #allocation0 [shape = 'u32[]', space=smem, size = 0x4, offset = 0x4, fixed_abs, tag = 'smem constant byte address 0x4 - core index']
  #allocation1 [shape = 'u32[144,128]{1,0:T(1,128)}', space=vmem, size = 0x12000, scoped, tag = 'internal scratch']
  %s0 = inlined_call_operand.hbm [shape: f32[8,2,32], index: 0, kind: input, shape index: {}]
  %s1 = inlined_call_operand.vmem [shape: f32[32,128], index: 1, kind: input, shape index: {}]
  %s2 = inlined_call_operand.vmem [shape: f32[1,128], index: 2, kind: input, shape index: {}]
  %s3 = inlined_call_operand.hbm [shape: f32[64,256], index: 3, kind: input, shape index: {}]
  %s4 = inlined_call_operand.vmem [shape: f32[1,128], index: 4, kind: input, shape index: {}]
  %s5 = inlined_call_operand.vmem [shape: f32[32,7], index: 5, kind: input, shape index: {}]
  %s6 = inlined_call_operand.vmem [shape: f32[1,7], index: 6, kind: input, shape index: {}]
  %s7 = inlined_call_operand.vmem [shape: f32[16,7], index: 7, kind: output, shape index: {}]
  %s8 = sld [smem:[#allocation0]]
  $region46: #{tpu_custom_call.1} parent=0
    _
  %s10 = ssub.s32 1, %s8
  %s11 = scalar_select 0, %s10, %s8
  $region1: #{tpu_custom_call.1} parent=0
    #allocation2 [shape = 'u8[8192]{0}', space=vmem, size = 0x2000, scoped, tag = 'input window, operand 0, single buffered']
    #allocation3 [shape = 's32[1]{0}', space=sflag, size = 0x4, scoped, tag = 'scoped memory for tpu_custom_call.1']
    #allocation4 [shape = 'u8[65536]{0}', space=vmem, size = 0x10000, scoped, tag = 'input window, operand 3, single buffered']
    #allocation5 [shape = 's32[1]{0}', space=sflag, size = 0x4, scoped, tag = 'scoped memory for tpu_custom_call.1']
    %12 = vsyncpa [#allocation3], 0
    %13 = vsyncpa [#allocation5], 0
    // Predicated region
    $region2: #{tpu_custom_call.1} parent=1 // pred_check
      _
    $region3: #{tpu_custom_call.1} parent=1 // pred_check_branch
      %15 = sbr.rel (0) target = $region5
    $region4: #{tpu_custom_call.1} parent=1 // pred_region
      %s17 = ssub.s32 256, 256
      %18 = vsyncadd [#allocation3], %s17
      %s19 = sshll.u32 [#allocation2], 4
      %s20 = int_to_ptr.vmem [resolvable:$true] %s19
      %25 = dma.hbm_to_vmem [thread:$0]  %s0, 256, %s20, [#allocation3], 32, 32, 2
    $region5: #{tpu_custom_call.1} parent=1 // pred_fallthru
      _
    // Predicated region
    $region6: #{tpu_custom_call.1} parent=1 // pred_check
      _
    $region7: #{tpu_custom_call.1} parent=1 // pred_check_branch
      %27 = sbr.rel (0) target = $region9
    $region8: #{tpu_custom_call.1} parent=1 // pred_region
      _
    $region9: #{tpu_custom_call.1} parent=1 // pred_fallthru
      _
    // Predicated region
    $region10: #{tpu_custom_call.1} parent=1 // pred_check
      _
    $region11: #{tpu_custom_call.1} parent=1 // pred_check_branch
      %29 = sbr.rel (0) target = $region13
    $region12: #{tpu_custom_call.1} parent=1 // pred_region
      _
    $region13: #{tpu_custom_call.1} parent=1 // pred_fallthru
      _
    // Predicated region
    $region14: #{tpu_custom_call.1} parent=1 // pred_check
      _
    $region15: #{tpu_custom_call.1} parent=1 // pred_check_branch
      %31 = sbr.rel (0) target = $region17
    $region16: #{tpu_custom_call.1} parent=1 // pred_region
      %s33 = ssub.s32 2048, 2048
      %34 = vsyncadd [#allocation5], %s33
      %s35 = sshll.u32 [#allocation4], 4
      %s36 = int_to_ptr.vmem [resolvable:$true] %s35
      %41 = dma.hbm_to_vmem [thread:$0]  %s3, 2048, %s36, [#allocation5], 256, 256, 16
    $region17: #{tpu_custom_call.1} parent=1 // pred_fallthru
      _
    // Predicated region
    $region18: #{tpu_custom_call.1} parent=1 // pred_check
      _
    $region19: #{tpu_custom_call.1} parent=1 // pred_check_branch
      %43 = sbr.rel (0) target = $region21
    $region20: #{tpu_custom_call.1} parent=1 // pred_region
      _
    $region21: #{tpu_custom_call.1} parent=1 // pred_fallthru
      _
    // Predicated region
    $region22: #{tpu_custom_call.1} parent=1 // pred_check
      _
    $region23: #{tpu_custom_call.1} parent=1 // pred_check_branch
      %45 = sbr.rel (0) target = $region25
    $region24: #{tpu_custom_call.1} parent=1 // pred_region
      _
    $region25: #{tpu_custom_call.1} parent=1 // pred_fallthru
      _
    // Predicated region
    $region26: #{tpu_custom_call.1} parent=1 // pred_check
      _
    $region27: #{tpu_custom_call.1} parent=1 // pred_check_branch
      %47 = sbr.rel (0) target = $region29
    $region28: #{tpu_custom_call.1} parent=1 // pred_region
      _
    $region29: #{tpu_custom_call.1} parent=1 // pred_fallthru
      _
    // Predicated region
    $region30: #{tpu_custom_call.1} parent=1 // pred_check
      _
    $region31: #{tpu_custom_call.1} parent=1 // pred_check_branch
      %49 = sbr.rel (0) target = $region33
    $region32: #{tpu_custom_call.1} parent=1 // pred_region
      %50 = dma.done [#allocation3], 256
    $region33: #{tpu_custom_call.1} parent=1 // pred_fallthru
      _
    // Predicated region
    $region34: #{tpu_custom_call.1} parent=1 // pred_check
      _
    $region35: #{tpu_custom_call.1} parent=1 // pred_check_branch
      %52 = sbr.rel (0) target = $region37
    $region36: #{tpu_custom_call.1} parent=1 // pred_region
      %53 = dma.done [#allocation5], 2048
    $region37: #{tpu_custom_call.1} parent=1 // pred_fallthru
      _
    %v54 = vld [vmem:[#allocation2] sm:$0x3]
    %v55 = vld [vmem:[#allocation2 + $0x2] sm:$0x3]
    %v56 = vld [vmem:[#allocation2 + $0x4] sm:$0x3]
    %v57 = vld [vmem:[#allocation2 + $0x6] sm:$0x3]
    %v58 = vld [vmem:[#allocation2 + $0x8] sm:$0x3]
    %v59 = vld [vmem:[#allocation2 + $0xa] sm:$0x3]
    %v60 = vld [vmem:[#allocation2 + $0xc] sm:$0x3]
    %v61 = vld [vmem:[#allocation2 + $0xe] sm:$0x3]
    %v62 = vld [vmem:[%s1] sm:$0xff]
    %v63 = vld [vmem:[%s1 + $0x8] sm:$0xff]
    %v64 = vld [vmem:[%s1 + $0x10] sm:$0xff]
    %v65 = vld [vmem:[%s1 + $0x18] sm:$0xff]
    %v66 = vld [vmem:[%s2] sm:$0x1]
    %v68 = vlaneseq
    %v69 = vshrl.u32 %v68, 7
    %v70 = vsub.s32 0, %v69
    %v71 = vrot.slane %v66, %v70
    %v81 = vcombine.low %v54, %v55
    %v82 = vcombine.low %v56, %v57
    %v84 = vunpack.c.l.s4 1983009808
    %v85 = vunpack.c.0.s8 %v84
    %v86 = vlaneseq
    %v87 = vshrl.u32 %v86, 7
    %v88 = vsub.s32 %v85, %v87
    %v89 = vrot.slane %v81, %v88
    %v91 = vunpack.c.l.s4 1983009808
    %v92 = vunpack.c.0.s8 %v91
    %v93 = vlaneseq
    %v94 = vshrl.u32 %v93, 7
    %v95 = vsub.s32 %v92, %v94
    %v96 = vrot.slane %v82, %v95
    %v97 = vcombine.low %v89, %v96
    %v98 = vcombine.low %v58, %v59
    %v99 = vcombine.low %v60, %v61
    %v101 = vunpack.c.l.s4 1983009808
    %v102 = vunpack.c.0.s8 %v101
    %v103 = vlaneseq
    %v104 = vshrl.u32 %v103, 7
    %v105 = vsub.s32 %v102, %v104
    %v106 = vrot.slane %v98, %v105
    %v108 = vunpack.c.l.s4 1983009808
    %v109 = vunpack.c.0.s8 %v108
    %v110 = vlaneseq
    %v111 = vshrl.u32 %v110, 7
    %v112 = vsub.s32 %v109, %v111
    %v113 = vrot.slane %v99, %v112
    %v114 = vcombine.low %v106, %v113
    %vm115 = vcmask 261120
    %v116 = vsel %vm115, %v97, 0
    %v118 = vsel %vm115, %v114, 0
    %120 = vmatprep.subr.mxu0 0.0
    %121 = vmatpush1.msra.mxu0 %v62
    %122 = vmatprep.subr.mxu0 0.0
    %123 = vmatpush1.msra.mxu0 %v63
    %124 = vmatprep.subr.mxu0 0.0
    %125 = vmatpush1.msra.mxu0 %v64
    %126 = vmatprep.subr.mxu0 0.0
    %127 = vmatpush1.msra.mxu0 %v65
    %128 = vmatprep.subr.mxu0 0.0
    %129 = vmatpush1.msra.mxu0 0.0
    %130 = vmatprep.subr.mxu0 0.0
    %131 = vmatpush1.msra.mxu0 0.0
    %132 = vmatprep.subr.mxu0 0.0
    %133 = vmatpush1.msra.mxu0 0.0
    %134 = vmatprep.subr.mxu0 0.0
    %135 = vmatpush1.msra.mxu0 0.0
    %136 = vmatprep.subr.mxu0 0.0
    %137 = vmatpush1.msra.mxu0 0.0
    %138 = vmatprep.subr.mxu0 0.0
    %139 = vmatpush1.msra.mxu0 0.0
    %140 = vmatprep.subr.mxu0 0.0
    %141 = vmatpush1.msra.mxu0 0.0
    %142 = vmatprep.subr.mxu0 0.0
    %143 = vmatpush1.msra.mxu0 0.0
    %144 = vmatprep.subr.mxu0 0.0
    %145 = vmatpush1.msra.mxu0 0.0
    %146 = vmatprep.subr.mxu0 0.0
    %147 = vmatpush1.msra.mxu0 0.0
    %148 = vmatprep.subr.mxu0 0.0
    %149 = vmatpush1.msra.mxu0 0.0
    %150 = vmatprep.subr.mxu0 0.0
    %151 = vmatpush1.msra.mxu0 0.0
    %152 = vmatprep.subr.mxu0 0.0
    %153 = vmatpush1.msra.mxu0 0.0
    %154 = vmatprep.subr.mxu0 0.0
    %155 = vmatpush1.msra.mxu0 0.0
    %156 = vmatprep.subr.mxu0 0.0
    %157 = vmatpush1.msra.mxu0 0.0
    %158 = vmatprep.subr.mxu0 0.0
    %159 = vmatpush1.msra.mxu0 0.0
    %160 = vmatprep.subr.mxu0 0.0
    %161 = vmatpush1.msra.mxu0 0.0
    %162 = vmatprep.subr.mxu0 0.0
    %163 = vmatpush1.msra.mxu0 0.0
    %164 = vmatprep.subr.mxu0 0.0
    %165 = vmatpush1.msra.mxu0 0.0
    %166 = vmatprep.subr.mxu0 0.0
    %167 = vmatpush1.msra.mxu0 0.0
    %168 = vmatprep.subr.mxu0 0.0
    %169 = vmatpush1.msra.mxu0 0.0
    %170 = vmatprep.subr.mxu0 0.0
    %171 = vmatpush1.msra.mxu0 0.0
    %172 = vmatprep.subr.mxu0 0.0
    %173 = vmatpush1.msra.mxu0 0.0
    %174 = vmatprep.subr.mxu0 0.0
    %175 = vmatpush1.msra.mxu0 0.0
    %176 = vmatprep.subr.mxu0 0.0
    %177 = vmatpush1.msra.mxu0 0.0
    %178 = vmatprep.subr.mxu0 0.0
    %179 = vmatpush1.msra.mxu0 0.0
    %180 = vmatprep.subr.mxu0 0.0
    %181 = vmatpush1.msra.mxu0 0.0
    %182 = vmatprep.subr.mxu0 0.0
    %183 = vmatpush1.msra.mxu0 0.0
    %184 = vmatprep.mubr.f32.mxu0 0.0
    %185 = vmatmul.mubr.f32.gmra.mrb[0].mxu0 %v116
    %v186 = vpop.f32.mrb[0].mxu0
    %v187 = vadd.f32 %v71, %v186
    %v188 = vpop.f32.mrb[0].mxu0
    %189 = vmatprep.mubr.f32.mxu0 0.0
    %190 = vmatmul.mubr.f32.gmra.mrb[0].mxu0 %v118
    %v191 = vpop.f32.mrb[0].mxu0
    %v192 = vadd.f32 %v71, %v191
    %v193 = vpop.f32.mrb[0].mxu0
    %194 = vdwg.mxu0
    %v195 = vld [vmem:[#allocation4] sm:$0xff]
    %v196 = vld [vmem:[#allocation4 + $0x8] sm:$0xff]
    %v197 = vld [vmem:[#allocation4 + $0x10] sm:$0xff]
    %v198 = vld [vmem:[#allocation4 + $0x18] sm:$0xff]
    %v199 = vld [vmem:[#allocation4 + $0x20] sm:$0xff]
    %v200 = vld [vmem:[#allocation4 + $0x28] sm:$0xff]
    %v201 = vld [vmem:[#allocation4 + $0x30] sm:$0xff]
    %v202 = vld [vmem:[#allocation4 + $0x38] sm:$0xff]
    %v203 = vld [vmem:[#allocation4 + $0x40] sm:$0xff]
    %v204 = vld [vmem:[#allocation4 + $0x48] sm:$0xff]
    %v205 = vld [vmem:[#allocation4 + $0x50] sm:$0xff]
    %v206 = vld [vmem:[#allocation4 + $0x58] sm:$0xff]
    %v207 = vld [vmem:[#allocation4 + $0x60] sm:$0xff]
    %v208 = vld [vmem:[#allocation4 + $0x68] sm:$0xff]
    %v209 = vld [vmem:[#allocation4 + $0x70] sm:$0xff]
    %v210 = vld [vmem:[#allocation4 + $0x78] sm:$0xff]
    %v211 = vld [vmem:[%s4] sm:$0x1]
    %v212 = vxor.u32 %v187, 2147483648
    %v213 = vmul.f32 %v212, 1.442695
    %v214 = vpow.pop %v213
    %v215 = vadd.f32 %v214, 1.0
    %v216 = vrcp.pop %v215
    %v217 = vmul.f32 1.0, %v216
    %v218 = vtanh.pop %v187
    %v219 = vmul.f32 %v217, 0.0
    %221 = vrot.lane.b32.xlu0 %v218, 64
    %v222 = vpop.permute.xlu0 %221
    %v224 = vmul.f32 %v217, %v222
    %226 = vrot.lane.b32.xlu0 %v224, 32
    %v227 = vpop.permute.xlu0 %226
    %v229 = vadd.f32 %v219, %v227
    %v230 = vtanh.pop %v229
    %232 = vrot.lane.b32.xlu0 %v230, 64
    %v233 = vpop.permute.xlu0 %232
    %v235 = vmul.f32 %v217, %v233
    %237 = vrot.lane.b32.xlu0 %v235, 32
    %v238 = vpop.permute.xlu0 %237
    %v240 = vsel %vm115, %v238, 0.0
    %vm241 = vcmask 523264
    %v243 = vsel %vm241, %v240, 0
    %245 = vmatprep.subr.mxu0 %v196
    %246 = vmatpush1.msra.mxu0 %v195
    %247 = vmatprep.subr.mxu0 %v198
    %248 = vmatpush1.msra.mxu0 %v197
    %249 = vmatprep.subr.mxu0 %v200
    %250 = vmatpush1.msra.mxu0 %v199
    %251 = vmatprep.subr.mxu0 %v202
    %252 = vmatpush1.msra.mxu0 %v201
    %253 = vmatprep.subr.mxu0 %v204
    %254 = vmatpush1.msra.mxu0 %v203
    %255 = vmatprep.subr.mxu0 %v206
    %256 = vmatpush1.msra.mxu0 %v205
    %257 = vmatprep.subr.mxu0 %v208
    %258 = vmatpush1.msra.mxu0 %v207
    %259 = vmatprep.subr.mxu0 %v210
    %260 = vmatpush1.msra.mxu0 %v209
    %261 = vmatprep.subr.mxu0 0.0
    %262 = vmatpush1.msra.mxu0 0.0
    %263 = vmatprep.subr.mxu0 0.0
    %264 = vmatpush1.msra.mxu0 0.0
    %265 = vmatprep.subr.mxu0 0.0
    %266 = vmatpush1.msra.mxu0 0.0
    %267 = vmatprep.subr.mxu0 0.0
    %268 = vmatpush1.msra.mxu0 0.0
    %269 = vmatprep.subr.mxu0 0.0
    %270 = vmatpush1.msra.mxu0 0.0
    %271 = vmatprep.subr.mxu0 0.0
    %272 = vmatpush1.msra.mxu0 0.0
    %273 = vmatprep.subr.mxu0 0.0
    %274 = vmatpush1.msra.mxu0 0.0
    %275 = vmatprep.subr.mxu0 0.0
    %276 = vmatpush1.msra.mxu0 0.0
    %277 = vmatprep.subr.mxu0 0.0
    %278 = vmatpush1.msra.mxu0 0.0
    %279 = vmatprep.subr.mxu0 0.0
    %280 = vmatpush1.msra.mxu0 0.0
    %281 = vmatprep.subr.mxu0 0.0
    %282 = vmatpush1.msra.mxu0 0.0
    %283 = vmatprep.subr.mxu0 0.0
    %284 = vmatpush1.msra.mxu0 0.0
    %285 = vmatprep.subr.mxu0 0.0
    %286 = vmatpush1.msra.mxu0 0.0
    %287 = vmatprep.subr.mxu0 0.0
    %288 = vmatpush1.msra.mxu0 0.0
    %289 = vmatprep.subr.mxu0 0.0
    %290 = vmatpush1.msra.mxu0 0.0
    %291 = vmatprep.subr.mxu0 0.0
    %292 = vmatpush1.msra.mxu0 0.0
    %293 = vmatprep.subr.mxu0 0.0
    %294 = vmatpush1.msra.mxu0 0.0
    %295 = vmatprep.subr.mxu0 0.0
    %296 = vmatpush1.msra.mxu0 0.0
    %297 = vmatprep.subr.mxu0 0.0
    %298 = vmatpush1.msra.mxu0 0.0
    %299 = vmatprep.subr.mxu0 0.0
    %300 = vmatpush1.msra.mxu0 0.0
    %301 = vmatprep.subr.mxu0 0.0
    %302 = vmatpush1.msra.mxu0 0.0
    %303 = vmatprep.subr.mxu0 0.0
    %304 = vmatpush1.msra.mxu0 0.0
    %305 = vmatprep.subr.mxu0 0.0
    %306 = vmatpush1.msra.mxu0 0.0
    %307 = vmatprep.subr.mxu0 0.0
    %308 = vmatpush1.msra.mxu0 0.0
    %309 = vmatprep.mubr.f32.mxu0 0.0
    %310 = vmatmul.mubr.f32.gmra.mrb[0].mxu0 %v243
    %v311 = vpop.f32.mrb[0].mxu0
    %v312 = vadd.f32 0.0, %v311
    %v313 = vpop.f32.mrb[0].mxu0
    %v314 = vadd.f32 0.0, %v313
    %315 = vdwg.mxu0
    %v317 = vlaneseq
    %v318 = vshrl.u32 %v317, 7
    %v319 = vsub.s32 0, %v318
    %v320 = vrot.slane %v211, %v319
    %v322 = vadd.f32 %v314, %v320
    %v323 = vxor.u32 %v322, 2147483648
    %v324 = vmul.f32 %v323, 1.442695
    %v325 = vpow.pop %v324
    %v326 = vadd.f32 %v325, 1.0
    %v327 = vrcp.pop %v326
    %v328 = vmul.f32 1.0, %v327
    %v329 = vtanh.pop %v322
    %v330 = vmul.f32 %v328, 0.0
    %332 = vrot.lane.b32.xlu0 %v329, 64
    %v333 = vpop.permute.xlu0 %332
    %v335 = vmul.f32 %v328, %v333
    %337 = vrot.lane.b32.xlu0 %v335, 32
    %v338 = vpop.permute.xlu0 %337
    %v340 = vadd.f32 %v330, %v338
    %v341 = vtanh.pop %v340
    %343 = vrot.lane.b32.xlu0 %v341, 64
    %v344 = vpop.permute.xlu0 %343
    %v346 = vmul.f32 %v328, %v344
    %v348 = vrot.slane %v312, 6
    %v350 = vadd.f32 %v187, %v348
    %v351 = vxor.u32 %v350, 2147483648
    %v352 = vmul.f32 %v351, 1.442695
    %v353 = vpow.pop %v352
    %v354 = vadd.f32 %v353, 1.0
    %v355 = vrcp.pop %v354
    %v356 = vmul.f32 1.0, %v355
    %v357 = vtanh.pop %v350
    %v359 = vrot.slane %v229, 6
    %v361 = vmul.f32 %v356, %v359
    %363 = vrot.lane.b32.xlu0 %v357, 64
    %v364 = vpop.permute.xlu0 %363
    %v366 = vmul.f32 %v356, %v364
    %368 = vrot.lane.b32.xlu0 %v366, 32
    %v369 = vpop.permute.xlu0 %368
    %v371 = vadd.f32 %v361, %v369
    %v372 = vtanh.pop %v371
    %374 = vrot.lane.b32.xlu0 %v372, 64
    %v375 = vpop.permute.xlu0 %374
    %v377 = vmul.f32 %v356, %v375
    %379 = vrot.lane.b32.xlu0 %v377, 32
    %v380 = vpop.permute.xlu0 %379
    %v383 = vrot.slane %v346, 6
    %384 = vrot.lane.b32.xlu0 %v383, 64
    %v385 = vpop.permute.xlu0 %384
    %v387 = vsel %vm115, %v380, %v385
    %v389 = vrot.slane %v387, 2
    %v390 = vsel %vm241, %v389, 0
    %392 = vmatprep.subr.mxu0 %v196
    %393 = vmatpush1.msra.mxu0 %v195
    %394 = vmatprep.subr.mxu0 %v198
    %395 = vmatpush1.msra.mxu0 %v197
    %396 = vmatprep.subr.mxu0 %v200
    %397 = vmatpush1.msra.mxu0 %v199
    %398 = vmatprep.subr.mxu0 %v202
    %399 = vmatpush1.msra.mxu0 %v201
    %400 = vmatprep.subr.mxu0 %v204
    %401 = vmatpush1.msra.mxu0 %v203
    %402 = vmatprep.subr.mxu0 %v206
    %403 = vmatpush1.msra.mxu0 %v205
    %404 = vmatprep.subr.mxu0 %v208
    %405 = vmatpush1.msra.mxu0 %v207
    %406 = vmatprep.subr.mxu0 %v210
    %407 = vmatpush1.msra.mxu0 %v209
    %408 = vmatprep.subr.mxu0 0.0
    %409 = vmatpush1.msra.mxu0 0.0
    %410 = vmatprep.subr.mxu0 0.0
    %411 = vmatpush1.msra.mxu0 0.0
    %412 = vmatprep.subr.mxu0 0.0
    %413 = vmatpush1.msra.mxu0 0.0
    %414 = vmatprep.subr.mxu0 0.0
    %415 = vmatpush1.msra.mxu0 0.0
    %416 = vmatprep.subr.mxu0 0.0
    %417 = vmatpush1.msra.mxu0 0.0
    %418 = vmatprep.subr.mxu0 0.0
    %419 = vmatpush1.msra.mxu0 0.0
    %420 = vmatprep.subr.mxu0 0.0
    %421 = vmatpush1.msra.mxu0 0.0
    %422 = vmatprep.subr.mxu0 0.0
    %423 = vmatpush1.msra.mxu0 0.0
    %424 = vmatprep.subr.mxu0 0.0
    %425 = vmatpush1.msra.mxu0 0.0
    %426 = vmatprep.subr.mxu0 0.0
    %427 = vmatpush1.msra.mxu0 0.0
    %428 = vmatprep.subr.mxu0 0.0
    %429 = vmatpush1.msra.mxu0 0.0
    %430 = vmatprep.subr.mxu0 0.0
    %431 = vmatpush1.msra.mxu0 0.0
    %432 = vmatprep.subr.mxu0 0.0
    %433 = vmatpush1.msra.mxu0 0.0
    %434 = vmatprep.subr.mxu0 0.0
    %435 = vmatpush1.msra.mxu0 0.0
    %436 = vmatprep.subr.mxu0 0.0
    %437 = vmatpush1.msra.mxu0 0.0
    %438 = vmatprep.subr.mxu0 0.0
    %439 = vmatpush1.msra.mxu0 0.0
    %440 = vmatprep.subr.mxu0 0.0
    %441 = vmatpush1.msra.mxu0 0.0
    %442 = vmatprep.subr.mxu0 0.0
    %443 = vmatpush1.msra.mxu0 0.0
    %444 = vmatprep.subr.mxu0 0.0
    %445 = vmatpush1.msra.mxu0 0.0
    %446 = vmatprep.subr.mxu0 0.0
    %447 = vmatpush1.msra.mxu0 0.0
    %448 = vmatprep.subr.mxu0 0.0
    %449 = vmatpush1.msra.mxu0 0.0
    %450 = vmatprep.subr.mxu0 0.0
    %451 = vmatpush1.msra.mxu0 0.0
    %452 = vmatprep.subr.mxu0 0.0
    %453 = vmatpush1.msra.mxu0 0.0
    %454 = vmatprep.subr.mxu0 0.0
    %455 = vmatpush1.msra.mxu0 0.0
    %456 = vmatprep.mubr.f32.mxu0 0.0
    %457 = vmatmul.mubr.f32.gmra.mrb[0].mxu0 %v390
    %v458 = vpop.f32.mrb[0].mxu0
    %v459 = vadd.f32 0.0, %v458
    %v460 = vpop.f32.mrb[0].mxu0
    %v461 = vadd.f32 0.0, %v460
    %462 = vdwg.mxu0
    %v463 = vadd.f32 %v461, %v320
    %v464 = vxor.u32 %v463, 2147483648
    %v465 = vmul.f32 %v464, 1.442695
    %v466 = vpow.pop %v465
    %v467 = vadd.f32 %v466, 1.0
    %v468 = vrcp.pop %v467
    %v469 = vmul.f32 1.0, %v468
    %v470 = vtanh.pop %v463
    %v471 = vmul.f32 %v469, %v340
    %473 = vrot.lane.b32.xlu0 %v470, 64
    %v474 = vpop.permute.xlu0 %473
    %v476 = vmul.f32 %v469, %v474
    %478 = vrot.lane.b32.xlu0 %v476, 32
    %v479 = vpop.permute.xlu0 %478
    %v481 = vadd.f32 %v471, %v479
    %v482 = vtanh.pop %v481
    %484 = vrot.lane.b32.xlu0 %v482, 64
    %v485 = vpop.permute.xlu0 %484
    %v487 = vmul.f32 %v469, %v485
    %v489 = vrot.slane %v459, 4
    %v491 = vadd.f32 %v187, %v489
    %v492 = vxor.u32 %v491, 2147483648
    %v493 = vmul.f32 %v492, 1.442695
    %v494 = vpow.pop %v493
    %v495 = vadd.f32 %v494, 1.0
    %v496 = vrcp.pop %v495
    %v497 = vmul.f32 1.0, %v496
    %v498 = vtanh.pop %v491
    %v500 = vrot.slane %v371, 6
    %v502 = vmul.f32 %v497, %v500
    %504 = vrot.lane.b32.xlu0 %v498, 64
    %v505 = vpop.permute.xlu0 %504
    %v507 = vmul.f32 %v497, %v505
    %509 = vrot.lane.b32.xlu0 %v507, 32
    %v510 = vpop.permute.xlu0 %509
    %v512 = vadd.f32 %v502, %v510
    %v513 = vtanh.pop %v512
    %515 = vrot.lane.b32.xlu0 %v513, 64
    %v516 = vpop.permute.xlu0 %515
    %v518 = vmul.f32 %v497, %v516
    %520 = vrot.lane.b32.xlu0 %v518, 32
    %v521 = vpop.permute.xlu0 %520
    %v524 = vrot.slane %v487, 4
    %525 = vrot.lane.b32.xlu0 %v524, 64
    %v526 = vpop.permute.xlu0 %525
    %v528 = vsel %vm115, %v521, %v526
    %v530 = vrot.slane %v528, 4
    %v531 = vsel %vm241, %v530, 0
    %533 = vmatprep.subr.mxu0 %v196
    %534 = vmatpush1.msra.mxu0 %v195
    %535 = vmatprep.subr.mxu0 %v198
    %536 = vmatpush1.msra.mxu0 %v197
    %537 = vmatprep.subr.mxu0 %v200
    %538 = vmatpush1.msra.mxu0 %v199
    %539 = vmatprep.subr.mxu0 %v202
    %540 = vmatpush1.msra.mxu0 %v201
    %541 = vmatprep.subr.mxu0 %v204
    %542 = vmatpush1.msra.mxu0 %v203
    %543 = vmatprep.subr.mxu0 %v206
    %544 = vmatpush1.msra.mxu0 %v205
    %545 = vmatprep.subr.mxu0 %v208
    %546 = vmatpush1.msra.mxu0 %v207
    %547 = vmatprep.subr.mxu0 %v210
    %548 = vmatpush1.msra.mxu0 %v209
    %549 = vmatprep.subr.mxu0 0.0
    %550 = vmatpush1.msra.mxu0 0.0
    %551 = vmatprep.subr.mxu0 0.0
    %552 = vmatpush1.msra.mxu0 0.0
    %553 = vmatprep.subr.mxu0 0.0
    %554 = vmatpush1.msra.mxu0 0.0
    %555 = vmatprep.subr.mxu0 0.0
    %556 = vmatpush1.msra.mxu0 0.0
    %557 = vmatprep.subr.mxu0 0.0
    %558 = vmatpush1.msra.mxu0 0.0
    %559 = vmatprep.subr.mxu0 0.0
    %560 = vmatpush1.msra.mxu0 0.0
    %561 = vmatprep.subr.mxu0 0.0
    %562 = vmatpush1.msra.mxu0 0.0
    %563 = vmatprep.subr.mxu0 0.0
    %564 = vmatpush1.msra.mxu0 0.0
    %565 = vmatprep.subr.mxu0 0.0
    %566 = vmatpush1.msra.mxu0 0.0
    %567 = vmatprep.subr.mxu0 0.0
    %568 = vmatpush1.msra.mxu0 0.0
    %569 = vmatprep.subr.mxu0 0.0
    %570 = vmatpush1.msra.mxu0 0.0
    %571 = vmatprep.subr.mxu0 0.0
    %572 = vmatpush1.msra.mxu0 0.0
    %573 = vmatprep.subr.mxu0 0.0
    %574 = vmatpush1.msra.mxu0 0.0
    %575 = vmatprep.subr.mxu0 0.0
    %576 = vmatpush1.msra.mxu0 0.0
    %577 = vmatprep.subr.mxu0 0.0
    %578 = vmatpush1.msra.mxu0 0.0
    %579 = vmatprep.subr.mxu0 0.0
    %580 = vmatpush1.msra.mxu0 0.0
    %581 = vmatprep.subr.mxu0 0.0
    %582 = vmatpush1.msra.mxu0 0.0
    %583 = vmatprep.subr.mxu0 0.0
    %584 = vmatpush1.msra.mxu0 0.0
    %585 = vmatprep.subr.mxu0 0.0
    %586 = vmatpush1.msra.mxu0 0.0
    %587 = vmatprep.subr.mxu0 0.0
    %588 = vmatpush1.msra.mxu0 0.0
    %589 = vmatprep.subr.mxu0 0.0
    %590 = vmatpush1.msra.mxu0 0.0
    %591 = vmatprep.subr.mxu0 0.0
    %592 = vmatpush1.msra.mxu0 0.0
    %593 = vmatprep.subr.mxu0 0.0
    %594 = vmatpush1.msra.mxu0 0.0
    %595 = vmatprep.subr.mxu0 0.0
    %596 = vmatpush1.msra.mxu0 0.0
    %597 = vmatprep.mubr.f32.mxu0 0.0
    %598 = vmatmul.mubr.f32.gmra.mrb[0].mxu0 %v531
    %v599 = vpop.f32.mrb[0].mxu0
    %v600 = vadd.f32 0.0, %v599
    %v601 = vpop.f32.mrb[0].mxu0
    %v602 = vadd.f32 0.0, %v601
    %603 = vdwg.mxu0
    %v604 = vadd.f32 %v602, %v320
    %v605 = vxor.u32 %v604, 2147483648
    %v606 = vmul.f32 %v605, 1.442695
    %v607 = vpow.pop %v606
    %v608 = vadd.f32 %v607, 1.0
    %v609 = vrcp.pop %v608
    %v610 = vmul.f32 1.0, %v609
    %v611 = vtanh.pop %v604
    %v612 = vmul.f32 %v610, %v481
    %614 = vrot.lane.b32.xlu0 %v611, 64
    %v615 = vpop.permute.xlu0 %614
    %v617 = vmul.f32 %v610, %v615
    %619 = vrot.lane.b32.xlu0 %v617, 32
    %v620 = vpop.permute.xlu0 %619
    %v622 = vadd.f32 %v612, %v620
    %v623 = vtanh.pop %v622
    %625 = vrot.lane.b32.xlu0 %v623, 64
    %v626 = vpop.permute.xlu0 %625
    %v628 = vmul.f32 %v610, %v626
    %v630 = vrot.slane %v600, 2
    %v632 = vadd.f32 %v187, %v630
    %v633 = vxor.u32 %v632, 2147483648
    %v634 = vmul.f32 %v633, 1.442695
    %v635 = vpow.pop %v634
    %v636 = vadd.f32 %v635, 1.0
    %v637 = vrcp.pop %v636
    %v638 = vmul.f32 1.0, %v637
    %v639 = vtanh.pop %v632
    %v641 = vrot.slane %v512, 6
    %v643 = vmul.f32 %v638, %v641
    %645 = vrot.lane.b32.xlu0 %v639, 64
    %v646 = vpop.permute.xlu0 %645
    %v648 = vmul.f32 %v638, %v646
    %650 = vrot.lane.b32.xlu0 %v648, 32
    %v651 = vpop.permute.xlu0 %650
    %v653 = vadd.f32 %v643, %v651
    %v654 = vtanh.pop %v653
    %656 = vrot.lane.b32.xlu0 %v654, 64
    %v657 = vpop.permute.xlu0 %656
    %v659 = vmul.f32 %v638, %v657
    %661 = vrot.lane.b32.xlu0 %v659, 32
    %v662 = vpop.permute.xlu0 %661
    %v665 = vrot.slane %v628, 2
    %666 = vrot.lane.b32.xlu0 %v665, 64
    %v667 = vpop.permute.xlu0 %666
    %v669 = vsel %vm115, %v662, %v667
    %v671 = vrot.slane %v669, 6
    %v672 = vsel %vm241, %v671, 0
    %674 = vmatprep.subr.mxu0 %v196
    %675 = vmatpush1.msra.mxu0 %v195
    %676 = vmatprep.subr.mxu0 %v198
    %677 = vmatpush1.msra.mxu0 %v197
    %678 = vmatprep.subr.mxu0 %v200
    %679 = vmatpush1.msra.mxu0 %v199
    %680 = vmatprep.subr.mxu0 %v202
    %681 = vmatpush1.msra.mxu0 %v201
    %682 = vmatprep.subr.mxu0 %v204
    %683 = vmatpush1.msra.mxu0 %v203
    %684 = vmatprep.subr.mxu0 %v206
    %685 = vmatpush1.msra.mxu0 %v205
    %686 = vmatprep.subr.mxu0 %v208
    %687 = vmatpush1.msra.mxu0 %v207
    %688 = vmatprep.subr.mxu0 %v210
    %689 = vmatpush1.msra.mxu0 %v209
    %690 = vmatprep.subr.mxu0 0.0
    %691 = vmatpush1.msra.mxu0 0.0
    %692 = vmatprep.subr.mxu0 0.0
    %693 = vmatpush1.msra.mxu0 0.0
    %694 = vmatprep.subr.mxu0 0.0
    %695 = vmatpush1.msra.mxu0 0.0
    %696 = vmatprep.subr.mxu0 0.0
    %697 = vmatpush1.msra.mxu0 0.0
    %698 = vmatprep.subr.mxu0 0.0
    %699 = vmatpush1.msra.mxu0 0.0
    %700 = vmatprep.subr.mxu0 0.0
    %701 = vmatpush1.msra.mxu0 0.0
    %702 = vmatprep.subr.mxu0 0.0
    %703 = vmatpush1.msra.mxu0 0.0
    %704 = vmatprep.subr.mxu0 0.0
    %705 = vmatpush1.msra.mxu0 0.0
    %706 = vmatprep.subr.mxu0 0.0
    %707 = vmatpush1.msra.mxu0 0.0
    %708 = vmatprep.subr.mxu0 0.0
    %709 = vmatpush1.msra.mxu0 0.0
    %710 = vmatprep.subr.mxu0 0.0
    %711 = vmatpush1.msra.mxu0 0.0
    %712 = vmatprep.subr.mxu0 0.0
    %713 = vmatpush1.msra.mxu0 0.0
    %714 = vmatprep.subr.mxu0 0.0
    %715 = vmatpush1.msra.mxu0 0.0
    %716 = vmatprep.subr.mxu0 0.0
    %717 = vmatpush1.msra.mxu0 0.0
    %718 = vmatprep.subr.mxu0 0.0
    %719 = vmatpush1.msra.mxu0 0.0
    %720 = vmatprep.subr.mxu0 0.0
    %721 = vmatpush1.msra.mxu0 0.0
    %722 = vmatprep.subr.mxu0 0.0
    %723 = vmatpush1.msra.mxu0 0.0
    %724 = vmatprep.subr.mxu0 0.0
    %725 = vmatpush1.msra.mxu0 0.0
    %726 = vmatprep.subr.mxu0 0.0
    %727 = vmatpush1.msra.mxu0 0.0
    %728 = vmatprep.subr.mxu0 0.0
    %729 = vmatpush1.msra.mxu0 0.0
    %730 = vmatprep.subr.mxu0 0.0
    %731 = vmatpush1.msra.mxu0 0.0
    %732 = vmatprep.subr.mxu0 0.0
    %733 = vmatpush1.msra.mxu0 0.0
    %734 = vmatprep.subr.mxu0 0.0
    %735 = vmatpush1.msra.mxu0 0.0
    %736 = vmatprep.subr.mxu0 0.0
    %737 = vmatpush1.msra.mxu0 0.0
    %738 = vmatprep.mubr.f32.mxu0 0.0
    %739 = vmatmul.mubr.f32.gmra.mrb[0].mxu0 %v672
    %v740 = vpop.f32.mrb[0].mxu0
    %v741 = vadd.f32 0.0, %v740
    %v742 = vpop.f32.mrb[0].mxu0
    %v743 = vadd.f32 0.0, %v742
    %744 = vdwg.mxu0
    %v745 = vadd.f32 %v743, %v320
    %v746 = vxor.u32 %v745, 2147483648
    %v747 = vmul.f32 %v746, 1.442695
    %v748 = vpow.pop %v747
    %v749 = vadd.f32 %v748, 1.0
    %v750 = vrcp.pop %v749
    %v751 = vmul.f32 1.0, %v750
    %v752 = vtanh.pop %v745
    %v753 = vmul.f32 %v751, %v622
    %755 = vrot.lane.b32.xlu0 %v752, 64
    %v756 = vpop.permute.xlu0 %755
    %v758 = vmul.f32 %v751, %v756
    %760 = vrot.lane.b32.xlu0 %v758, 32
    %v761 = vpop.permute.xlu0 %760
    %v763 = vadd.f32 %v753, %v761
    %v764 = vtanh.pop %v763
    %766 = vrot.lane.b32.xlu0 %v764, 64
    %v767 = vpop.permute.xlu0 %766
    %v769 = vmul.f32 %v751, %v767
    %v770 = vadd.f32 %v192, %v741
    %v771 = vxor.u32 %v770, 2147483648
    %v772 = vmul.f32 %v771, 1.442695
    %v773 = vpow.pop %v772
    %v774 = vadd.f32 %v773, 1.0
    %v775 = vrcp.pop %v774
    %v776 = vmul.f32 1.0, %v775
    %v777 = vtanh.pop %v770
    %v779 = vrot.slane %v653, 6
    %v781 = vmul.f32 %v776, %v779
    %783 = vrot.lane.b32.xlu0 %v777, 64
    %v784 = vpop.permute.xlu0 %783
    %v786 = vmul.f32 %v776, %v784
    %788 = vrot.lane.b32.xlu0 %v786, 32
    %v789 = vpop.permute.xlu0 %788
    %v791 = vadd.f32 %v781, %v789
    %v792 = vtanh.pop %v791
    %794 = vrot.lane.b32.xlu0 %v792, 64
    %v795 = vpop.permute.xlu0 %794
    %v797 = vmul.f32 %v776, %v795
    %799 = vrot.lane.b32.xlu0 %v797, 32
    %v800 = vpop.permute.xlu0 %799
    %803 = vrot.lane.b32.xlu0 %v769, 64
    %v804 = vpop.permute.xlu0 %803
    %v806 = vsel %vm115, %v800, %v804
    %v808 = vsel %vm241, %v806, 0
    %810 = vmatprep.subr.mxu0 %v196
    %811 = vmatpush1.msra.mxu0 %v195
    %812 = vmatprep.subr.mxu0 %v198
    %813 = vmatpush1.msra.mxu0 %v197
    %814 = vmatprep.subr.mxu0 %v200
    %815 = vmatpush1.msra.mxu0 %v199
    %816 = vmatprep.subr.mxu0 %v202
    %817 = vmatpush1.msra.mxu0 %v201
    %818 = vmatprep.subr.mxu0 %v204
    %819 = vmatpush1.msra.mxu0 %v203
    %820 = vmatprep.subr.mxu0 %v206
    %821 = vmatpush1.msra.mxu0 %v205
    %822 = vmatprep.subr.mxu0 %v208
    %823 = vmatpush1.msra.mxu0 %v207
    %824 = vmatprep.subr.mxu0 %v210
    %825 = vmatpush1.msra.mxu0 %v209
    %826 = vmatprep.subr.mxu0 0.0
    %827 = vmatpush1.msra.mxu0 0.0
    %828 = vmatprep.subr.mxu0 0.0
    %829 = vmatpush1.msra.mxu0 0.0
    %830 = vmatprep.subr.mxu0 0.0
    %831 = vmatpush1.msra.mxu0 0.0
    %832 = vmatprep.subr.mxu0 0.0
    %833 = vmatpush1.msra.mxu0 0.0
    %834 = vmatprep.subr.mxu0 0.0
    %835 = vmatpush1.msra.mxu0 0.0
    %836 = vmatprep.subr.mxu0 0.0
    %837 = vmatpush1.msra.mxu0 0.0
    %838 = vmatprep.subr.mxu0 0.0
    %839 = vmatpush1.msra.mxu0 0.0
    %840 = vmatprep.subr.mxu0 0.0
    %841 = vmatpush1.msra.mxu0 0.0
    %842 = vmatprep.subr.mxu0 0.0
    %843 = vmatpush1.msra.mxu0 0.0
    %844 = vmatprep.subr.mxu0 0.0
    %845 = vmatpush1.msra.mxu0 0.0
    %846 = vmatprep.subr.mxu0 0.0
    %847 = vmatpush1.msra.mxu0 0.0
    %848 = vmatprep.subr.mxu0 0.0
    %849 = vmatpush1.msra.mxu0 0.0
    %850 = vmatprep.subr.mxu0 0.0
    %851 = vmatpush1.msra.mxu0 0.0
    %852 = vmatprep.subr.mxu0 0.0
    %853 = vmatpush1.msra.mxu0 0.0
    %854 = vmatprep.subr.mxu0 0.0
    %855 = vmatpush1.msra.mxu0 0.0
    %856 = vmatprep.subr.mxu0 0.0
    %857 = vmatpush1.msra.mxu0 0.0
    %858 = vmatprep.subr.mxu0 0.0
    %859 = vmatpush1.msra.mxu0 0.0
    %860 = vmatprep.subr.mxu0 0.0
    %861 = vmatpush1.msra.mxu0 0.0
    %862 = vmatprep.subr.mxu0 0.0
    %863 = vmatpush1.msra.mxu0 0.0
    %864 = vmatprep.subr.mxu0 0.0
    %865 = vmatpush1.msra.mxu0 0.0
    %866 = vmatprep.subr.mxu0 0.0
    %867 = vmatpush1.msra.mxu0 0.0
    %868 = vmatprep.subr.mxu0 0.0
    %869 = vmatpush1.msra.mxu0 0.0
    %870 = vmatprep.subr.mxu0 0.0
    %871 = vmatpush1.msra.mxu0 0.0
    %872 = vmatprep.subr.mxu0 0.0
    %873 = vmatpush1.msra.mxu0 0.0
    %874 = vmatprep.mubr.f32.mxu0 0.0
    %875 = vmatmul.mubr.f32.gmra.mrb[0].mxu0 %v808
    %v876 = vpop.f32.mrb[0].mxu0
    %v877 = vadd.f32 0.0, %v876
    %v878 = vpop.f32.mrb[0].mxu0
    %v879 = vadd.f32 0.0, %v878
    %880 = vdwg.mxu0
    %v881 = vadd.f32 %v879, %v320
    %v882 = vxor.u32 %v881, 2147483648
    %v883 = vmul.f32 %v882, 1.442695
    %v884 = vpow.pop %v883
    %v885 = vadd.f32 %v884, 1.0
    %v886 = vrcp.pop %v885
    %v887 = vmul.f32 1.0, %v886
    %v888 = vtanh.pop %v881
    %v889 = vmul.f32 %v887, %v763
    %891 = vrot.lane.b32.xlu0 %v888, 64
    %v892 = vpop.permute.xlu0 %891
    %v894 = vmul.f32 %v887, %v892
    %896 = vrot.lane.b32.xlu0 %v894, 32
    %v897 = vpop.permute.xlu0 %896
    %v899 = vadd.f32 %v889, %v897
    %v900 = vtanh.pop %v899
    %902 = vrot.lane.b32.xlu0 %v900, 64
    %v903 = vpop.permute.xlu0 %902
    %v905 = vmul.f32 %v887, %v903
    %v907 = vrot.slane %v877, 6
    %v909 = vadd.f32 %v192, %v907
    %v910 = vxor.u32 %v909, 2147483648
    %v911 = vmul.f32 %v910, 1.442695
    %v912 = vpow.pop %v911
    %v913 = vadd.f32 %v912, 1.0
    %v914 = vrcp.pop %v913
    %v915 = vmul.f32 1.0, %v914
    %v916 = vtanh.pop %v909
    %v918 = vrot.slane %v791, 6
    %v920 = vmul.f32 %v915, %v918
    %922 = vrot.lane.b32.xlu0 %v916, 64
    %v923 = vpop.permute.xlu0 %922
    %v925 = vmul.f32 %v915, %v923
    %927 = vrot.lane.b32.xlu0 %v925, 32
    %v928 = vpop.permute.xlu0 %927
    %v930 = vadd.f32 %v920, %v928
    %v931 = vtanh.pop %v930
    %933 = vrot.lane.b32.xlu0 %v931, 64
    %v934 = vpop.permute.xlu0 %933
    %v936 = vmul.f32 %v915, %v934
    %938 = vrot.lane.b32.xlu0 %v936, 32
    %v939 = vpop.permute.xlu0 %938
    %v942 = vrot.slane %v905, 6
    %943 = vrot.lane.b32.xlu0 %v942, 64
    %v944 = vpop.permute.xlu0 %943
    %v946 = vsel %vm115, %v939, %v944
    %v948 = vrot.slane %v946, 2
    %v949 = vsel %vm241, %v948, 0
    %951 = vmatprep.subr.mxu0 %v196
    %952 = vmatpush1.msra.mxu0 %v195
    %953 = vmatprep.subr.mxu0 %v198
    %954 = vmatpush1.msra.mxu0 %v197
    %955 = vmatprep.subr.mxu0 %v200
    %956 = vmatpush1.msra.mxu0 %v199
    %957 = vmatprep.subr.mxu0 %v202
    %958 = vmatpush1.msra.mxu0 %v201
    %959 = vmatprep.subr.mxu0 %v204
    %960 = vmatpush1.msra.mxu0 %v203
    %961 = vmatprep.subr.mxu0 %v206
    %962 = vmatpush1.msra.mxu0 %v205
    %963 = vmatprep.subr.mxu0 %v208
    %964 = vmatpush1.msra.mxu0 %v207
    %965 = vmatprep.subr.mxu0 %v210
    %966 = vmatpush1.msra.mxu0 %v209
    %967 = vmatprep.subr.mxu0 0.0
    %968 = vmatpush1.msra.mxu0 0.0
    %969 = vmatprep.subr.mxu0 0.0
    %970 = vmatpush1.msra.mxu0 0.0
    %971 = vmatprep.subr.mxu0 0.0
    %972 = vmatpush1.msra.mxu0 0.0
    %973 = vmatprep.subr.mxu0 0.0
    %974 = vmatpush1.msra.mxu0 0.0
    %975 = vmatprep.subr.mxu0 0.0
    %976 = vmatpush1.msra.mxu0 0.0
    %977 = vmatprep.subr.mxu0 0.0
    %978 = vmatpush1.msra.mxu0 0.0
    %979 = vmatprep.subr.mxu0 0.0
    %980 = vmatpush1.msra.mxu0 0.0
    %981 = vmatprep.subr.mxu0 0.0
    %982 = vmatpush1.msra.mxu0 0.0
    %983 = vmatprep.subr.mxu0 0.0
    %984 = vmatpush1.msra.mxu0 0.0
    %985 = vmatprep.subr.mxu0 0.0
    %986 = vmatpush1.msra.mxu0 0.0
    %987 = vmatprep.subr.mxu0 0.0
    %988 = vmatpush1.msra.mxu0 0.0
    %989 = vmatprep.subr.mxu0 0.0
    %990 = vmatpush1.msra.mxu0 0.0
    %991 = vmatprep.subr.mxu0 0.0
    %992 = vmatpush1.msra.mxu0 0.0
    %993 = vmatprep.subr.mxu0 0.0
    %994 = vmatpush1.msra.mxu0 0.0
    %995 = vmatprep.subr.mxu0 0.0
    %996 = vmatpush1.msra.mxu0 0.0
    %997 = vmatprep.subr.mxu0 0.0
    %998 = vmatpush1.msra.mxu0 0.0
    %999 = vmatprep.subr.mxu0 0.0
    %1000 = vmatpush1.msra.mxu0 0.0
    %1001 = vmatprep.subr.mxu0 0.0
    %1002 = vmatpush1.msra.mxu0 0.0
    %1003 = vmatprep.subr.mxu0 0.0
    %1004 = vmatpush1.msra.mxu0 0.0
    %1005 = vmatprep.subr.mxu0 0.0
    %1006 = vmatpush1.msra.mxu0 0.0
    %1007 = vmatprep.subr.mxu0 0.0
    %1008 = vmatpush1.msra.mxu0 0.0
    %1009 = vmatprep.subr.mxu0 0.0
    %1010 = vmatpush1.msra.mxu0 0.0
    %1011 = vmatprep.subr.mxu0 0.0
    %1012 = vmatpush1.msra.mxu0 0.0
    %1013 = vmatprep.subr.mxu0 0.0
    %1014 = vmatpush1.msra.mxu0 0.0
    %1015 = vmatprep.mubr.f32.mxu0 0.0
    %1016 = vmatmul.mubr.f32.gmra.mrb[0].mxu0 %v949
    %v1017 = vpop.f32.mrb[0].mxu0
    %v1018 = vadd.f32 0.0, %v1017
    %v1019 = vpop.f32.mrb[0].mxu0
    %v1020 = vadd.f32 0.0, %v1019
    %1021 = vdwg.mxu0
    %v1022 = vadd.f32 %v1020, %v320
    %v1023 = vxor.u32 %v1022, 2147483648
    %v1024 = vmul.f32 %v1023, 1.442695
    %v1025 = vpow.pop %v1024
    %v1026 = vadd.f32 %v1025, 1.0
    %v1027 = vrcp.pop %v1026
    %v1028 = vmul.f32 1.0, %v1027
    %v1029 = vtanh.pop %v1022
    %v1030 = vmul.f32 %v1028, %v899
    %1032 = vrot.lane.b32.xlu0 %v1029, 64
    %v1033 = vpop.permute.xlu0 %1032
    %v1035 = vmul.f32 %v1028, %v1033
    %1037 = vrot.lane.b32.xlu0 %v1035, 32
    %v1038 = vpop.permute.xlu0 %1037
    %v1040 = vadd.f32 %v1030, %v1038
    %v1041 = vtanh.pop %v1040
    %1043 = vrot.lane.b32.xlu0 %v1041, 64
    %v1044 = vpop.permute.xlu0 %1043
    %v1046 = vmul.f32 %v1028, %v1044
    %v1048 = vrot.slane %v1018, 4
    %v1050 = vadd.f32 %v192, %v1048
    %v1051 = vxor.u32 %v1050, 2147483648
    %v1052 = vmul.f32 %v1051, 1.442695
    %v1053 = vpow.pop %v1052
    %v1054 = vadd.f32 %v1053, 1.0
    %v1055 = vrcp.pop %v1054
    %v1056 = vmul.f32 1.0, %v1055
    %v1057 = vtanh.pop %v1050
    %v1059 = vrot.slane %v930, 6
    %v1061 = vmul.f32 %v1056, %v1059
    %1063 = vrot.lane.b32.xlu0 %v1057, 64
    %v1064 = vpop.permute.xlu0 %1063
    %v1066 = vmul.f32 %v1056, %v1064
    %1068 = vrot.lane.b32.xlu0 %v1066, 32
    %v1069 = vpop.permute.xlu0 %1068
    %v1071 = vadd.f32 %v1061, %v1069
    %v1072 = vtanh.pop %v1071
    %1074 = vrot.lane.b32.xlu0 %v1072, 64
    %v1075 = vpop.permute.xlu0 %1074
    %v1077 = vmul.f32 %v1056, %v1075
    %1079 = vrot.lane.b32.xlu0 %v1077, 32
    %v1080 = vpop.permute.xlu0 %1079
    %v1083 = vrot.slane %v1046, 4
    %1084 = vrot.lane.b32.xlu0 %v1083, 64
    %v1085 = vpop.permute.xlu0 %1084
    %v1087 = vsel %vm115, %v1080, %v1085
    %v1089 = vrot.slane %v1087, 4
    %v1090 = vsel %vm241, %v1089, 0
    %1092 = vmatprep.subr.mxu0 %v196
    %1093 = vmatpush1.msra.mxu0 %v195
    %1094 = vmatprep.subr.mxu0 %v198
    %1095 = vmatpush1.msra.mxu0 %v197
    %1096 = vmatprep.subr.mxu0 %v200
    %1097 = vmatpush1.msra.mxu0 %v199
    %1098 = vmatprep.subr.mxu0 %v202
    %1099 = vmatpush1.msra.mxu0 %v201
    %1100 = vmatprep.subr.mxu0 %v204
    %1101 = vmatpush1.msra.mxu0 %v203
    %1102 = vmatprep.subr.mxu0 %v206
    %1103 = vmatpush1.msra.mxu0 %v205
    %1104 = vmatprep.subr.mxu0 %v208
    %1105 = vmatpush1.msra.mxu0 %v207
    %1106 = vmatprep.subr.mxu0 %v210
    %1107 = vmatpush1.msra.mxu0 %v209
    %1108 = vmatprep.subr.mxu0 0.0
    %1109 = vmatpush1.msra.mxu0 0.0
    %1110 = vmatprep.subr.mxu0 0.0
    %1111 = vmatpush1.msra.mxu0 0.0
    %1112 = vmatprep.subr.mxu0 0.0
    %1113 = vmatpush1.msra.mxu0 0.0
    %1114 = vmatprep.subr.mxu0 0.0
    %1115 = vmatpush1.msra.mxu0 0.0
    %1116 = vmatprep.subr.mxu0 0.0
    %1117 = vmatpush1.msra.mxu0 0.0
    %1118 = vmatprep.subr.mxu0 0.0
    %1119 = vmatpush1.msra.mxu0 0.0
    %1120 = vmatprep.subr.mxu0 0.0
    %1121 = vmatpush1.msra.mxu0 0.0
    %1122 = vmatprep.subr.mxu0 0.0
    %1123 = vmatpush1.msra.mxu0 0.0
    %1124 = vmatprep.subr.mxu0 0.0
    %1125 = vmatpush1.msra.mxu0 0.0
    %1126 = vmatprep.subr.mxu0 0.0
    %1127 = vmatpush1.msra.mxu0 0.0
    %1128 = vmatprep.subr.mxu0 0.0
    %1129 = vmatpush1.msra.mxu0 0.0
    %1130 = vmatprep.subr.mxu0 0.0
    %1131 = vmatpush1.msra.mxu0 0.0
    %1132 = vmatprep.subr.mxu0 0.0
    %1133 = vmatpush1.msra.mxu0 0.0
    %1134 = vmatprep.subr.mxu0 0.0
    %1135 = vmatpush1.msra.mxu0 0.0
    %1136 = vmatprep.subr.mxu0 0.0
    %1137 = vmatpush1.msra.mxu0 0.0
    %1138 = vmatprep.subr.mxu0 0.0
    %1139 = vmatpush1.msra.mxu0 0.0
    %1140 = vmatprep.subr.mxu0 0.0
    %1141 = vmatpush1.msra.mxu0 0.0
    %1142 = vmatprep.subr.mxu0 0.0
    %1143 = vmatpush1.msra.mxu0 0.0
    %1144 = vmatprep.subr.mxu0 0.0
    %1145 = vmatpush1.msra.mxu0 0.0
    %1146 = vmatprep.subr.mxu0 0.0
    %1147 = vmatpush1.msra.mxu0 0.0
    %1148 = vmatprep.subr.mxu0 0.0
    %1149 = vmatpush1.msra.mxu0 0.0
    %1150 = vmatprep.subr.mxu0 0.0
    %1151 = vmatpush1.msra.mxu0 0.0
    %1152 = vmatprep.subr.mxu0 0.0
    %1153 = vmatpush1.msra.mxu0 0.0
    %1154 = vmatprep.subr.mxu0 0.0
    %1155 = vmatpush1.msra.mxu0 0.0
    %1156 = vmatprep.mubr.f32.mxu0 0.0
    %1157 = vmatmul.mubr.f32.gmra.mrb[0].mxu0 %v1090
    %v1158 = vpop.f32.mrb[0].mxu0
    %v1159 = vadd.f32 0.0, %v1158
    %v1160 = vpop.f32.mrb[0].mxu0
    %v1161 = vadd.f32 0.0, %v1160
    %1162 = vdwg.mxu0
    %v1163 = vadd.f32 %v1161, %v320
    %v1164 = vxor.u32 %v1163, 2147483648
    %v1165 = vmul.f32 %v1164, 1.442695
    %v1166 = vpow.pop %v1165
    %v1167 = vadd.f32 %v1166, 1.0
    %v1168 = vrcp.pop %v1167
    %v1169 = vmul.f32 1.0, %v1168
    %v1170 = vtanh.pop %v1163
    %v1171 = vmul.f32 %v1169, %v1040
    %1173 = vrot.lane.b32.xlu0 %v1170, 64
    %v1174 = vpop.permute.xlu0 %1173
    %v1176 = vmul.f32 %v1169, %v1174
    %1178 = vrot.lane.b32.xlu0 %v1176, 32
    %v1179 = vpop.permute.xlu0 %1178
    %v1181 = vadd.f32 %v1171, %v1179
    %v1182 = vtanh.pop %v1181
    %1184 = vrot.lane.b32.xlu0 %v1182, 64
    %v1185 = vpop.permute.xlu0 %1184
    %v1187 = vmul.f32 %v1169, %v1185
    %v1189 = vrot.slane %v1159, 2
    %v1191 = vadd.f32 %v192, %v1189
    %v1192 = vxor.u32 %v1191, 2147483648
    %v1193 = vmul.f32 %v1192, 1.442695
    %v1194 = vpow.pop %v1193
    %v1195 = vadd.f32 %v1194, 1.0
    %v1196 = vrcp.pop %v1195
    %v1197 = vmul.f32 1.0, %v1196
    %v1198 = vtanh.pop %v1191
    %v1200 = vrot.slane %v1071, 6
    %v1202 = vmul.f32 %v1197, %v1200
    %1204 = vrot.lane.b32.xlu0 %v1198, 64
    %v1205 = vpop.permute.xlu0 %1204
    %v1207 = vmul.f32 %v1197, %v1205
    %1209 = vrot.lane.b32.xlu0 %v1207, 32
    %v1210 = vpop.permute.xlu0 %1209
    %v1212 = vadd.f32 %v1202, %v1210
    %v1213 = vtanh.pop %v1212
    %1215 = vrot.lane.b32.xlu0 %v1213, 64
    %v1216 = vpop.permute.xlu0 %1215
    %v1218 = vmul.f32 %v1197, %v1216
    %1220 = vrot.lane.b32.xlu0 %v1218, 32
    %v1221 = vpop.permute.xlu0 %1220
    %v1224 = vrot.slane %v1187, 2
    %1225 = vrot.lane.b32.xlu0 %v1224, 64
    %v1226 = vpop.permute.xlu0 %1225
    %v1228 = vsel %vm115, %v1221, %v1226
    %v1230 = vrot.slane %v1228, 6
    %v1231 = vsel %vm241, %v1230, 0
    %1233 = vmatprep.subr.mxu0 %v196
    %1234 = vmatpush1.msra.mxu0 %v195
    %1235 = vmatprep.subr.mxu0 %v198
    %1236 = vmatpush1.msra.mxu0 %v197
    %1237 = vmatprep.subr.mxu0 %v200
    %1238 = vmatpush1.msra.mxu0 %v199
    %1239 = vmatprep.subr.mxu0 %v202
    %1240 = vmatpush1.msra.mxu0 %v201
    %1241 = vmatprep.subr.mxu0 %v204
    %1242 = vmatpush1.msra.mxu0 %v203
    %1243 = vmatprep.subr.mxu0 %v206
    %1244 = vmatpush1.msra.mxu0 %v205
    %1245 = vmatprep.subr.mxu0 %v208
    %1246 = vmatpush1.msra.mxu0 %v207
    %1247 = vmatprep.subr.mxu0 %v210
    %1248 = vmatpush1.msra.mxu0 %v209
    %1249 = vmatprep.subr.mxu0 0.0
    %1250 = vmatpush1.msra.mxu0 0.0
    %1251 = vmatprep.subr.mxu0 0.0
    %1252 = vmatpush1.msra.mxu0 0.0
    %1253 = vmatprep.subr.mxu0 0.0
    %1254 = vmatpush1.msra.mxu0 0.0
    %1255 = vmatprep.subr.mxu0 0.0
    %1256 = vmatpush1.msra.mxu0 0.0
    %1257 = vmatprep.subr.mxu0 0.0
    %1258 = vmatpush1.msra.mxu0 0.0
    %1259 = vmatprep.subr.mxu0 0.0
    %1260 = vmatpush1.msra.mxu0 0.0
    %1261 = vmatprep.subr.mxu0 0.0
    %1262 = vmatpush1.msra.mxu0 0.0
    %1263 = vmatprep.subr.mxu0 0.0
    %1264 = vmatpush1.msra.mxu0 0.0
    %1265 = vmatprep.subr.mxu0 0.0
    %1266 = vmatpush1.msra.mxu0 0.0
    %1267 = vmatprep.subr.mxu0 0.0
    %1268 = vmatpush1.msra.mxu0 0.0
    %1269 = vmatprep.subr.mxu0 0.0
    %1270 = vmatpush1.msra.mxu0 0.0
    %1271 = vmatprep.subr.mxu0 0.0
    %1272 = vmatpush1.msra.mxu0 0.0
    %1273 = vmatprep.subr.mxu0 0.0
    %1274 = vmatpush1.msra.mxu0 0.0
    %1275 = vmatprep.subr.mxu0 0.0
    %1276 = vmatpush1.msra.mxu0 0.0
    %1277 = vmatprep.subr.mxu0 0.0
    %1278 = vmatpush1.msra.mxu0 0.0
    %1279 = vmatprep.subr.mxu0 0.0
    %1280 = vmatpush1.msra.mxu0 0.0
    %1281 = vmatprep.subr.mxu0 0.0
    %1282 = vmatpush1.msra.mxu0 0.0
    %1283 = vmatprep.subr.mxu0 0.0
    %1284 = vmatpush1.msra.mxu0 0.0
    %1285 = vmatprep.subr.mxu0 0.0
    %1286 = vmatpush1.msra.mxu0 0.0
    %1287 = vmatprep.subr.mxu0 0.0
    %1288 = vmatpush1.msra.mxu0 0.0
    %1289 = vmatprep.subr.mxu0 0.0
    %1290 = vmatpush1.msra.mxu0 0.0
    %1291 = vmatprep.subr.mxu0 0.0
    %1292 = vmatpush1.msra.mxu0 0.0
    %1293 = vmatprep.subr.mxu0 0.0
    %1294 = vmatpush1.msra.mxu0 0.0
    %1295 = vmatprep.subr.mxu0 0.0
    %1296 = vmatpush1.msra.mxu0 0.0
    %1297 = vmatprep.mubr.f32.mxu0 0.0
    %1298 = vmatmul.mubr.f32.gmra.mrb[0].mxu0 %v1231
    %v1299 = vpop.f32.mrb[0].mxu0
    %v1300 = vpop.f32.mrb[0].mxu0
    %v1301 = vadd.f32 0.0, %v1300
    %1302 = vdwg.mxu0
    %v1303 = vadd.f32 %v1301, %v320
    %v1304 = vxor.u32 %v1303, 2147483648
    %v1305 = vmul.f32 %v1304, 1.442695
    %v1306 = vpow.pop %v1305
    %v1307 = vadd.f32 %v1306, 1.0
    %v1308 = vrcp.pop %v1307
    %v1309 = vmul.f32 1.0, %v1308
    %v1310 = vtanh.pop %v1303
    %v1311 = vmul.f32 %v1309, %v1181
    %1313 = vrot.lane.b32.xlu0 %v1310, 64
    %v1314 = vpop.permute.xlu0 %1313
    %v1316 = vmul.f32 %v1309, %v1314
    %1318 = vrot.lane.b32.xlu0 %v1316, 32
    %v1319 = vpop.permute.xlu0 %1318
    %v1321 = vadd.f32 %v1311, %v1319
    %v1322 = vtanh.pop %v1321
    %1324 = vrot.lane.b32.xlu0 %v1322, 64
    %v1325 = vpop.permute.xlu0 %1324
    %v1327 = vmul.f32 %v1309, %v1325
    %v1328 = vrot.slane %v487, 6
    %v1330 = vrot.slane %v628, 4
    %v1332 = vrot.slane %v769, 2
    %v1334 = vrot.slane %v1046, 6
    %v1336 = vrot.slane %v1187, 4
    %v1339 = vrot.slane %v1327, 2
    %vm1341 = vcmask 1041408
    %v1342 = vsel %vm1341, %v346, %v1328
    %vm1343 = vcmask 1043456
    %v1344 = vsel %vm1343, %v1342, %v1330
    %vm1345 = vcmask 1045504
    %v1346 = vsel %vm1345, %v1344, %v1332
    %v1347 = vsel %vm1341, %v905, %v1334
    %v1348 = vsel %vm1343, %v1347, %v1336
    %v1349 = vsel %vm1345, %v1348, %v1339
    %v1350 = vld [vmem:[%s5] sm:$0xff]
    %v1351 = vld [vmem:[%s5 + $0x8] sm:$0xff]
    %v1352 = vld [vmem:[%s5 + $0x10] sm:$0xff]
    %v1353 = vld [vmem:[%s5 + $0x18] sm:$0xff]
    %v1354 = vld [vmem:[%s6] sm:$0x1]
    %v1356 = vlaneseq
    %v1357 = vshrl.u32 %v1356, 7
    %v1358 = vsub.s32 0, %v1357
    %v1359 = vrot.slane %v1354, %v1358
    %1363 = vrot.lane.b32.xlu0 %v1346, 32
    %v1364 = vpop.permute.xlu0 %1363
    %1365 = vrot.lane.b32.xlu0 %v1349, 32
    %v1366 = vpop.permute.xlu0 %1365
    %v1367 = vsel %vm115, %v1364, 0
    %v1369 = vsel %vm115, %v1366, 0
    %1371 = vmatprep.subr.mxu0 0.0
    %1372 = vmatpush1.msra.mxu0 %v1350
    %1373 = vmatprep.subr.mxu0 0.0
    %1374 = vmatpush1.msra.mxu0 %v1351
    %1375 = vmatprep.subr.mxu0 0.0
    %1376 = vmatpush1.msra.mxu0 %v1352
    %1377 = vmatprep.subr.mxu0 0.0
    %1378 = vmatpush1.msra.mxu0 %v1353
    %1379 = vmatprep.subr.mxu0 0.0
    %1380 = vmatpush1.msra.mxu0 0.0
    %1381 = vmatprep.subr.mxu0 0.0
    %1382 = vmatpush1.msra.mxu0 0.0
    %1383 = vmatprep.subr.mxu0 0.0
    %1384 = vmatpush1.msra.mxu0 0.0
    %1385 = vmatprep.subr.mxu0 0.0
    %1386 = vmatpush1.msra.mxu0 0.0
    %1387 = vmatprep.subr.mxu0 0.0
    %1388 = vmatpush1.msra.mxu0 0.0
    %1389 = vmatprep.subr.mxu0 0.0
    %1390 = vmatpush1.msra.mxu0 0.0
    %1391 = vmatprep.subr.mxu0 0.0
    %1392 = vmatpush1.msra.mxu0 0.0
    %1393 = vmatprep.subr.mxu0 0.0
    %1394 = vmatpush1.msra.mxu0 0.0
    %1395 = vmatprep.subr.mxu0 0.0
    %1396 = vmatpush1.msra.mxu0 0.0
    %1397 = vmatprep.subr.mxu0 0.0
    %1398 = vmatpush1.msra.mxu0 0.0
    %1399 = vmatprep.subr.mxu0 0.0
    %1400 = vmatpush1.msra.mxu0 0.0
    %1401 = vmatprep.subr.mxu0 0.0
    %1402 = vmatpush1.msra.mxu0 0.0
    %1403 = vmatprep.subr.mxu0 0.0
    %1404 = vmatpush1.msra.mxu0 0.0
    %1405 = vmatprep.subr.mxu0 0.0
    %1406 = vmatpush1.msra.mxu0 0.0
    %1407 = vmatprep.subr.mxu0 0.0
    %1408 = vmatpush1.msra.mxu0 0.0
    %1409 = vmatprep.subr.mxu0 0.0
    %1410 = vmatpush1.msra.mxu0 0.0
    %1411 = vmatprep.subr.mxu0 0.0
    %1412 = vmatpush1.msra.mxu0 0.0
    %1413 = vmatprep.subr.mxu0 0.0
    %1414 = vmatpush1.msra.mxu0 0.0
    %1415 = vmatprep.subr.mxu0 0.0
    %1416 = vmatpush1.msra.mxu0 0.0
    %1417 = vmatprep.subr.mxu0 0.0
    %1418 = vmatpush1.msra.mxu0 0.0
    %1419 = vmatprep.subr.mxu0 0.0
    %1420 = vmatpush1.msra.mxu0 0.0
    %1421 = vmatprep.subr.mxu0 0.0
    %1422 = vmatpush1.msra.mxu0 0.0
    %1423 = vmatprep.subr.mxu0 0.0
    %1424 = vmatpush1.msra.mxu0 0.0
    %1425 = vmatprep.subr.mxu0 0.0
    %1426 = vmatpush1.msra.mxu0 0.0
    %1427 = vmatprep.subr.mxu0 0.0
    %1428 = vmatpush1.msra.mxu0 0.0
    %1429 = vmatprep.subr.mxu0 0.0
    %1430 = vmatpush1.msra.mxu0 0.0
    %1431 = vmatprep.subr.mxu0 0.0
    %1432 = vmatpush1.msra.mxu0 0.0
    %1433 = vmatprep.subr.mxu0 0.0
    %1434 = vmatpush1.msra.mxu0 0.0
    %1435 = vmatprep.mubr.f32.mxu0 0.0
    %1436 = vmatmul.mubr.f32.gmra.mrb[0].mxu0 %v1367
    %v1437 = vpop.f32.mrb[0].mxu0
    %v1438 = vadd.f32 %v1359, %v1437
    %v1439 = vpop.f32.mrb[0].mxu0
    %1440 = vmatprep.mubr.f32.mxu0 0.0
    %1441 = vmatmul.mubr.f32.gmra.mrb[0].mxu0 %v1369
    %v1442 = vpop.f32.mrb[0].mxu0
    %v1443 = vadd.f32 %v1359, %v1442
    %v1444 = vpop.f32.mrb[0].mxu0
    %1445 = vdwg.mxu0
    %vm1446 = vcmask 56320
    %1447 = vst.msk [vmem:[%s7] sm:$0xff] %vm1446, %v1438
    %1448 = vst.msk [vmem:[%s7 + $0x8] sm:$0xff] %vm1446, %v1443
    // Predicated region
    $region38: #{tpu_custom_call.1} parent=1 // pred_check
      _
    $region39: #{tpu_custom_call.1} parent=1 // pred_check_branch
      %1450 = sbr.rel (0) target = $region41
    $region40: #{tpu_custom_call.1} parent=1 // pred_region
      _
    $region41: #{tpu_custom_call.1} parent=1 // pred_fallthru
      _
    // Predicated region
    $region42: #{tpu_custom_call.1} parent=1 // pred_check
      _
    $region43: #{tpu_custom_call.1} parent=1 // pred_check_branch
      %1452 = sbr.rel (0) target = $region45
    $region44: #{tpu_custom_call.1} parent=1 // pred_region
      _
    $region45: #{tpu_custom_call.1} parent=1 // pred_fallthru
      _
    %1453 = vsyncpa [#allocation3], 1
    %1454 = vsyncpa [#allocation5], 1

</llo_original>
